<compile_context>
chip_gen: v6e
topology: v6e:2x2x1
jax: 0.10.0
libtpu: 0.0.40
codegen_flags: <defaults>
</compile_context>

<pallas_src>
import jax
import jax.numpy as jnp
from jax import lax
from jax.experimental import pallas as pl
from jax.experimental.pallas import tpu as pltpu

LANE = 128
COMPUTE_DTYPE = jnp.bfloat16


def _round_up(x, m):
    return (x + m - 1) // m * m


def _largest_divisor_at_most(n, cap):
    for d in range(min(n, cap), 0, -1):
        if n % d == 0:
            return d
    return 1


# ----------------------------------------------------------------------------
# Generation-aware budgets (v7x: 64 MiB VMEM / 2 TCs; v5e/v6e: 128 MiB / 1 TC).
# ----------------------------------------------------------------------------
def _vmem_capacity_bytes():
    try:
        cap = getattr(pltpu.get_tpu_info(), "vmem_capacity_bytes", None)
        if cap:
            return int(cap)
    except Exception:
        pass
    try:
        if "v7" in jax.devices()[0].device_kind.lower():
            return 64 * 1024 * 1024
    except Exception:
        pass
    return 128 * 1024 * 1024


def _num_tensorcores_per_chip():
    try:
        kind = jax.devices()[0].device_kind.lower()
    except Exception:
        return 1
    return 2 if "v7" in kind else 1


def _pick_vmem_limit(cap):
    if cap <= 64 * 1024 * 1024:            # v7x: 64 MiB per TensorCore
        return 36 * 1024 * 1024
    return 48 * 1024 * 1024                # v5e / v6e: 128 MiB


def _pick_vocab_tile(Vp, vmem_cap):
    target = 2048 if vmem_cap > 64 * 1024 * 1024 else 1024
    return LANE * _largest_divisor_at_most(Vp // LANE, max(1, target // LANE))


def _pick_gru_batch_block(B):
    # Single-TC chips (v5e / v6e): never split the batch -- the "parallel" axis
    # would just be a serial loop that shrinks the per-step matmul M.
    # On v7x (2 TCs) split 2-way iff the halves stay 16-row aligned (bf16 out).
    if _num_tensorcores_per_chip() >= 2 and B % 2 == 0 and (B // 2) % 16 == 0:
        return B // 2
    return B


def _pick_gru_time_block(T, Bb, Hp, vmem_limit):
    # whh (double-buffered by the pipeline) + h0/hT/carry + biases
    fixed = 2 * (Hp * 3 * Hp * 2) + 3 * Bb * Hp * 4 + 2 * (3 * Hp * 4)
    tb = _largest_divisor_at_most(T, 32)
    while tb > 1:
        per = 2 * (tb * Bb * 3 * Hp * 2) + 2 * (tb * Bb * Hp * 2)   # xproj + out
        if fixed + per <= int(vmem_limit * 0.85):
            break
        tb = _largest_divisor_at_most(T, tb - 1)
    return tb


def _pick_attn_batch_block(B, Td, Te, Hp, vtile, vmem_limit, ntc):
    # Prefer the full batch (weight streamed exactly once); on 2-TC chips use a
    # 2-way split so both cores share the vocab projection.
    target = B // 2 if (ntc >= 2 and B % 2 == 0 and B >= 2) else B
    fixed = 2 * (2 * Hp * vtile * 2 + vtile * 4)        # weight + bias tiles
    bb = target
    while bb >= 1:
        if B % bb == 0:
            per = (2 * bb * Te * Hp * 2 + 2 * bb * Td * Hp * 2   # hs, dec
                   + bb * Td * Hp * 2                            # ctx scratch
                   + 2 * bb * Td * vtile * 4                     # logits
                   + 2 * bb * Td * Te * 4)                       # attention
            if fixed + per <= int(vmem_limit * 0.85):
                return bb
        bb -= 1
    return 1


# ----------------------------------------------------------------------------
# Kernel 1: single-layer GRU recurrence (PyTorch gate order r, z, n), time-major.
# The input projection is precomputed outside (one big bf16 matmul); the kernel
# only carries the serial h-dependent work: one fused matmul + gates per step.
# ----------------------------------------------------------------------------
def gru_kernel(xproj_ref, h0_ref, whh_ref, bh_ref, out_ref, hT_ref, h_carry):
    # xproj_ref: (Tb, Bb, 3H) bf16  precomputed x @ W_ih_fused + folded biases
    # h0_ref:    (Bb, H)      f32   initial hidden state
    # whh_ref:   (H, 3H)      bf16  fused recurrent weights [r | z | n]
    # bh_ref:    (1, 3H)      f32   [0 | 0 | b_hn]
    # out_ref:   (Tb, Bb, H)  bf16  per-step hidden states
    # hT_ref:    (Bb, H)      f32   final hidden state
    # h_carry:   VMEM (Bb, H) f32   hidden state carried across time blocks
    ti = pl.program_id(1)
    Tb = xproj_ref.shape[0]
    H3 = whh_ref.shape[1]
    H = H3 // 3

    @pl.when(ti == 0)
    def _():
        h_carry[...] = h0_ref[...]

    whh = whh_ref[...]
    bh = bh_ref[...]

    def step(t, h):
        gx = xproj_ref[t]                                        # (Bb, 3H) bf16
        gh = jnp.dot(h.astype(whh.dtype), whh,                   # one fused MXU matmul
                     preferred_element_type=jnp.float32) + bh
        # bf16 + f32 promotes to f32: gate math stays in f32.
        r = jax.nn.sigmoid(gx[:, :H] + gh[:, :H])
        z = jax.nn.sigmoid(gx[:, H:2 * H] + gh[:, H:2 * H])
        n = jnp.tanh(gx[:, 2 * H:] + r * gh[:, 2 * H:])
        h_new = n + z * (h - n)                                  # == (1-z)*n + z*h
        out_ref[t] = h_new.astype(out_ref.dtype)
        return h_new

    # Unroll so the LLO scheduler can overlap the next step's weight push / gx
    # load with the current step's EUP/VPU tail (modest factor to limit spills).
    h_final = lax.fori_loop(0, Tb, step, h_carry[...],
                            unroll=(True if Tb <= 16 else 2))
    h_carry[...] = h_final

    @pl.when(ti == pl.num_programs(1) - 1)
    def _():
        hT_ref[...] = h_final


def gru_forward(x_proj, h0, whh_f, bh_f, *, time_block=None, batch_block=None,
                out_dtype=COMPUTE_DTYPE):
    """x_proj: (T, B, 3H) bf16 time-major precomputed input projection."""
    T, B, H3 = x_proj.shape
    H = H3 // 3
    vmem_limit = _pick_vmem_limit(_vmem_capacity_bytes())

    if batch_block is None:
        batch_block = _pick_gru_batch_block(B)
    assert B % batch_block == 0
    if time_block is None:
        time_block = _pick_gru_time_block(T, batch_block, H, vmem_limit)
    assert T % time_block == 0
    nb, nt = B // batch_block, T // time_block

    flops = int(2 * T * B * H * H3)
    transcendentals = int(3 * T * B * H)
    bytes_accessed = int(T * B * H3 * 2 + T * B * H * 2 + H * H3 * 2
                         + 2 * B * H * 4 + H3 * 4)

    out, hT = pl.pallas_call(
        gru_kernel,
        out_shape=(jax.ShapeDtypeStruct((T, B, H), out_dtype),
                   jax.ShapeDtypeStruct((B, H), jnp.float32)),
        grid=(nb, nt),
        in_specs=[
            pl.BlockSpec((time_block, batch_block, H3), lambda bi, ti: (ti, bi, 0)),
            pl.BlockSpec((batch_block, H), lambda bi, ti: (bi, 0)),
            # NOTE: whh is grid-invariant; constant index map -> DMA'd once.
            pl.BlockSpec((H, H3), lambda bi, ti: (0, 0)),
            pl.BlockSpec((1, H3), lambda bi, ti: (0, 0)),
        ],
        out_specs=(
            pl.BlockSpec((time_block, batch_block, H), lambda bi, ti: (ti, bi, 0)),
            pl.BlockSpec((batch_block, H), lambda bi, ti: (bi, 0)),
        ),
        scratch_shapes=[pltpu.VMEM((batch_block, H), jnp.float32)],
        compiler_params=pltpu.CompilerParams(
            dimension_semantics=("parallel", "arbitrary"),
            vmem_limit_bytes=vmem_limit),
        cost_estimate=pl.CostEstimate(flops=flops,
                                      transcendentals=transcendentals,
                                      bytes_accessed=bytes_accessed),
    )(x_proj, h0, whh_f, bh_f)
    return out, hT


# ----------------------------------------------------------------------------
# Kernel 2: dot-product attention (softmax over encoder positions) + fused
# output projection, vocab-tiled.  Grid = (batch blocks, vocab tiles).
# ----------------------------------------------------------------------------
def attn_kernel(hs_ref, dec_ref, w_ref, b_ref, logits_ref, attn_ref, ctx_ref):
    # hs_ref:     (Bb, Te, H)      bf16  encoder hidden states
    # dec_ref:    (Bb, Td, H)      bf16  decoder GRU outputs (Td % 16 == 0)
    # w_ref:      (2H, TV)         bf16  fused hidden2linear weight, one vocab tile
    # b_ref:      (1, TV)          f32   bias, one vocab tile
    # logits_ref: (Bb*Td, TV)      f32
    # attn_ref:   (Bb, Td, Te)     f32   (transposed vs. the (B, Te, Td) API layout)
    # ctx_ref:    VMEM (Bb, Td, H) bf16  attention context, reused across vocab tiles
    vj = pl.program_id(1)
    Bb, Td, H = dec_ref.shape

    # Attention / context depend only on the batch block: compute them once
    # (first vocab tile) and reuse the VMEM scratch for every vocab tile.
    # NOTE: this is why the vocab grid axis must stay "arbitrary" (sequential).
    @pl.when(vj == 0)
    def _():
        hs = hs_ref[...]
        dec = dec_ref[...]
        # Scores with Te on the lane axis: softmax reduces along lanes and the
        # attention store is lane-dense; no XLU transpose of the attention matrix.
        s = jnp.einsum("btd,bed->bte", dec, hs,
                       preferred_element_type=jnp.float32)         # (Bb, Td, Te)
        s_max = jnp.max(s, axis=-1, keepdims=True)
        e = jnp.exp(s - s_max)
        attn = e * pl.reciprocal(jnp.sum(e, axis=-1, keepdims=True), approx=True)
        attn_ref[...] = attn
        ctx_ref[...] = jnp.einsum("bte,bed->btd", attn.astype(hs.dtype), hs,
                                  preferred_element_type=jnp.float32
                                  ).astype(ctx_ref.dtype)           # (Bb, Td, H)

    # Split-K projection (no concat copy): dec2d @ W_top + ctx2d @ W_bot + bias.
    # Reshapes are layout-trivial: Td % 16 == 0 (bf16 sublane packing), H % 128 == 0.
    dec2d = dec_ref[...].reshape(Bb * Td, H)
    ctx2d = ctx_ref[...].reshape(Bb * Td, H)
    logits = (jnp.dot(dec2d, w_ref[:H, :], preferred_element_type=jnp.float32)
              + jnp.dot(ctx2d, w_ref[H:, :], preferred_element_type=jnp.float32)
              + b_ref[...])
    logits_ref[...] = logits                                        # lane-dense store


def attention_linear(hs, dec_out, w_cat, b_cat, *, vocab_tile=None, batch_block=None):
    """hs: (B, Te, Hp) bf16; dec_out: (B, Td, Hp) bf16; returns (logits(B,Td,Vp), attn(B,Td,Te))."""
    B, Te, Hp = hs.shape
    _, Td, _ = dec_out.shape
    K2, Vp = w_cat.shape

    # Pad Td to a multiple of 16 so the in-kernel bf16 reshapes are free.
    # Padded rows produce harmless logits/attention that are sliced off below.
    Td_p = _round_up(Td, 16)
    if Td_p != Td:
        dec_out = jnp.pad(dec_out, ((0, 0), (0, Td_p - Td), (0, 0)))

    vmem_cap = _vmem_capacity_bytes()
    vmem_limit = _pick_vmem_limit(vmem_cap)
    if vocab_tile is None:
        vocab_tile = _pick_vocab_tile(Vp, vmem_cap)
    assert Vp % vocab_tile == 0
    if batch_block is None:
        batch_block = _pick_attn_batch_block(B, Td_p, Te, Hp, vocab_tile,
                                             vmem_limit, _num_tensorcores_per_chip())
    assert B % batch_block == 0
    nb, nv = B // batch_block, Vp // vocab_tile

    flops = int(2 * B * Td_p * (2 * Te * Hp) + 2 * B * Td_p * K2 * Vp)
    transcendentals = int(B * Td_p * Te)
    bytes_accessed = int(hs.size * 2 + dec_out.size * 2
                         + nb * (K2 * Vp * 2 + Vp * 4)     # weight streamed nb times
                         + B * Td_p * Vp * 4 + B * Td_p * Te * 4)

    logits_2d, attn_p = pl.pallas_call(
        attn_kernel,
        out_shape=(jax.ShapeDtypeStruct((B * Td_p, Vp), jnp.float32),
                   jax.ShapeDtypeStruct((B, Td_p, Te), jnp.float32)),
        grid=(nb, nv),
        in_specs=[
            pl.BlockSpec((batch_block, Te, Hp), lambda bi, vj: (bi, 0, 0)),
            pl.BlockSpec((batch_block, Td_p, Hp), lambda bi, vj: (bi, 0, 0)),
            # vocab-tiled weight stream keeps the (2H, V) matrix out of VMEM;
            # with batch_block == B it is DMA'd from HBM exactly once.
            pl.BlockSpec((K2, vocab_tile), lambda bi, vj: (0, vj)),
            pl.BlockSpec((1, vocab_tile), lambda bi, vj: (0, vj)),
        ],
        out_specs=(
            pl.BlockSpec((batch_block * Td_p, vocab_tile), lambda bi, vj: (bi, vj)),
            pl.BlockSpec((batch_block, Td_p, Te), lambda bi, vj: (bi, 0, 0)),
        ),
        scratch_shapes=[pltpu.VMEM((batch_block, Td_p, Hp), dec_out.dtype)],
        compiler_params=pltpu.CompilerParams(
            dimension_semantics=("parallel", "arbitrary"),
            vmem_limit_bytes=vmem_limit),
        cost_estimate=pl.CostEstimate(flops=flops,
                                      transcendentals=transcendentals,
                                      bytes_accessed=bytes_accessed),
    )(hs, dec_out, w_cat, b_cat)

    logits = logits_2d.reshape(B, Td_p, Vp)[:, :Td]
    attn = attn_p[:, :Td]
    return logits, attn


# ----------------------------------------------------------------------------
# Parameter preparation: fuse GRU gates, fold biases, pad feature dims to 128,
# cast matmul weights to bf16.
# ----------------------------------------------------------------------------
def prepare_params(params, compute_dtype=COMPUTE_DTYPE):
    emb = params["embedding"]
    w_ih, w_hh = params["w_ih"], params["w_hh"]
    b_ih, b_hh = params["b_ih"], params["b_hh"]
    w_lin, b_lin = params["w_lin"], params["b_lin"]
    V, E = emb.shape
    H = w_hh.shape[1]
    Ep, Hp, Vp = _round_up(E, LANE), _round_up(H, LANE), _round_up(V, LANE)

    def pad_axis(x, axis, target):
        pads = [(0, 0)] * x.ndim
        pads[axis] = (0, target - x.shape[axis])
        return jnp.pad(x, pads)

    emb_p = pad_axis(emb, 1, Ep)                                   # (V, Ep)

    # fused GRU weights, gate order [r | z | n], each gate zero-padded to 128 lanes
    wih_f = jnp.concatenate(
        [pad_axis(pad_axis(w_ih[g], 0, Ep), 1, Hp) for g in range(3)], axis=1)
    whh_f = jnp.concatenate(
        [pad_axis(pad_axis(w_hh[g], 0, Hp), 1, Hp) for g in range(3)], axis=1)

    def pad_bias(b):
        return pad_axis(b.reshape(1, -1), 1, Hp)

    # r/z biases fold together on the input side; the n gate keeps b_hn inside
    # r * (h @ W_hn + b_hn) as in PyTorch.
    bx_f = jnp.concatenate([pad_bias(b_ih[0] + b_hh[0]),
                            pad_bias(b_ih[1] + b_hh[1]),
                            pad_bias(b_ih[2])], axis=1)            # (1, 3Hp)
    zeros = jnp.zeros((1, Hp), jnp.float32)
    bh_f = jnp.concatenate([zeros, zeros, pad_bias(b_hh[2])], axis=1)

    # fused output projection: rows [0:Hp] act on GRU output, [Hp:2Hp] on context
    w_top = pad_axis(pad_axis(w_lin[:H], 0, Hp), 1, Vp)
    w_bot = pad_axis(pad_axis(w_lin[H:], 0, Hp), 1, Vp)
    w_cat = jnp.concatenate([w_top, w_bot], axis=0)                # (2Hp, Vp)
    b_cat = pad_axis(b_lin.reshape(1, -1), 1, Vp)                  # (1, Vp)

    return dict(embedding=emb_p,
                wih=wih_f.astype(compute_dtype),
                whh=whh_f.astype(compute_dtype),
                bx=bx_f, bh=bh_f,
                w_cat=w_cat.astype(compute_dtype),
                b_cat=b_cat)


# ----------------------------------------------------------------------------
# Full forward (glue in plain JAX, hot paths in the two kernels above).
# ----------------------------------------------------------------------------
def attention_decoder_forward(prepared, sequence, hs, h, *, time_block=None):
    # sequence: (B, Td) int32 ; hs: (B, Te, H) f32 ; h: (1, B, H) f32
    V = prepared["embedding"].shape[0]
    B, Td = sequence.shape
    H = hs.shape[2]
    Hp = prepared["whh"].shape[0]
    cd = prepared["wih"].dtype

    # TODO(synk): embedding gather + layout transposes stay in plain JAX; a Pallas
    # gather would need per-row DMA and is not worth it at these sizes.
    emb = prepared["embedding"][sequence]                          # (B, Td, Ep)
    x_tbe = jnp.transpose(emb, (1, 0, 2)).astype(cd)               # (Td, B, Ep)

    # Hoisted GRU input projection: one large MXU-friendly matmul off the serial
    # recurrence; the result is cast to bf16 to halve the GRU kernel's HBM stream.
    x_proj = (jnp.einsum("tbe,eg->tbg", x_tbe, prepared["wih"],
                         preferred_element_type=jnp.float32)
              + prepared["bx"]).astype(cd)                         # (Td, B, 3Hp) bf16

    h0 = jnp.pad(h[0], ((0, 0), (0, Hp - H)))                      # (B, Hp)
    out_tbh, hT = gru_forward(x_proj, h0, prepared["whh"], prepared["bh"],
                              time_block=time_block, out_dtype=cd)

    dec_out = jnp.transpose(out_tbh, (1, 0, 2))                    # (B, Td, Hp) bf16
    hs_p = jnp.pad(hs, ((0, 0), (0, 0), (0, Hp - H))).astype(cd)   # (B, Te, Hp) bf16

    logits_p, attn_tdte = attention_linear(hs_p, dec_out,
                                           prepared["w_cat"], prepared["b_cat"])
    logits = logits_p[..., :V]                                     # (B, Td, V)
    attn = jnp.transpose(attn_tdte, (0, 2, 1))                     # (B, Te, Td)
    state = hT[:, :H][None]                                        # (1, B, H)
    return logits, state, attn


# ----------------------------------------------------------------------------
# Pure-JAX f32 reference (same math, no Pallas) for correctness check.
# ----------------------------------------------------------------------------
def reference_forward(params, sequence, hs, h):
    emb = params["embedding"][sequence]
    wih, whh = params["w_ih"], params["w_hh"]
    bih, bhh = params["b_ih"], params["b_hh"]

    def cell(h_prev, x_t):
        r = jax.nn.sigmoid(x_t @ wih[0] + bih[0] + h_prev @ whh[0] + bhh[0])
        z = jax.nn.sigmoid(x_t @ wih[1] + bih[1] + h_prev @ whh[1] + bhh[1])
        n = jnp.tanh(x_t @ wih[2] + bih[2] + r * (h_prev @ whh[2] + bhh[2]))
        h_new = (1.0 - z) * n + z * h_prev
        return h_new, h_new

    hT, outs = lax.scan(cell, h[0], jnp.transpose(emb, (1, 0, 2)))
    out = jnp.transpose(outs, (1, 0, 2))                           # (B, Td, H)
    s = jnp.einsum("beh,bth->bet", hs, out)                        # (B, Te, Td)
    attn = jax.nn.softmax(s, axis=1)
    c = jnp.einsum("bet,beh->bth", attn, hs)                       # (B, Td, H)
    cat = jnp.concatenate([out, c], axis=-1)
    logits = cat @ params["w_lin"] + params["b_lin"]
    return logits, hT[None], attn


# ----------------------------------------------------------------------------
# Deterministic parameter init (shapes implied by the PyTorch __init__).
# ----------------------------------------------------------------------------
def init_params(key, vocab_size, embedding_dim, hidden_dim, pad_idx):
    ks = jax.random.split(key, 7)
    emb = 0.1 * jax.random.normal(ks[0], (vocab_size, embedding_dim), jnp.float32)
    emb = emb.at[pad_idx].set(0.0)                  # padding_idx row is zero
    w_ih = 0.1 * jax.random.normal(ks[1], (3, embedding_dim, hidden_dim), jnp.float32)
    w_hh = 0.1 * jax.random.normal(ks[2], (3, hidden_dim, hidden_dim), jnp.float32)
    b_ih = 0.1 * jax.random.normal(ks[3], (3, hidden_dim), jnp.float32)
    b_hh = 0.1 * jax.random.normal(ks[4], (3, hidden_dim), jnp.float32)
    w_lin = 0.1 * jax.random.normal(ks[5], (2 * hidden_dim, vocab_size), jnp.float32)
    b_lin = 0.1 * jax.random.normal(ks[6], (vocab_size,), jnp.float32)
    return dict(embedding=emb, w_ih=w_ih, w_hh=w_hh, b_ih=b_ih, b_hh=b_hh,
                w_lin=w_lin, b_lin=b_lin)


if __name__ == "__main__":
    vocab_size = 32
    embedding_dim = 16
    hidden_dim = 32
    batch_size = 2
    pad_idx = 0
    T_dec = 8
    T_enc = 10

    key = jax.random.PRNGKey(0)
    kp, k1, k2, k3 = jax.random.split(key, 4)
    params = init_params(kp, vocab_size, embedding_dim, hidden_dim, pad_idx)
    prepared = prepare_params(params)

    sequence = jax.random.randint(k1, (batch_size, T_dec), 0, vocab_size, jnp.int32)
    hs = jax.random.normal(k2, (batch_size, T_enc, hidden_dim), jnp.float32)
    h = jax.random.normal(k3, (1, batch_size, hidden_dim), jnp.float32)

    fwd = jax.jit(attention_decoder_forward, static_argnames=("time_block",))
    # time_block=4 -> 2 time blocks, exercises the VMEM-carried hidden state.
    logits, state, attn = fwd(prepared, sequence, hs, h, time_block=4)
    jax.block_until_ready((logits, state, attn))

    ref_logits, ref_state, ref_attn = reference_forward(params, sequence, hs, h)

    assert logits.shape == (batch_size, T_dec, vocab_size)
    assert state.shape == (1, batch_size, hidden_dim)
    assert attn.shape == (batch_size, T_enc, T_dec)
    # bf16 matmul operands / bf16 input-projection stream vs. f32 reference.
    assert jnp.allclose(logits, ref_logits, atol=5e-2, rtol=5e-2), "logits mismatch"
    assert jnp.allclose(state, ref_state, atol=5e-2, rtol=5e-2), "state mismatch"
    assert jnp.allclose(attn, ref_attn, atol=5e-2, rtol=5e-2), "attention mismatch"

    print("KERNEL_OK")
</pallas_src>

<mosaic_0001>
module attributes {stable_mosaic.version = 11 : i64} {
  func.func @gru_kernel(%arg0: i32, %arg1: i32, %arg2: memref<4x2x384xbf16, #tpu.memory_space<vmem>>, %arg3: memref<2x128xf32, #tpu.memory_space<vmem>>, %arg4: memref<128x384xbf16, #tpu.memory_space<vmem>>, %arg5: memref<1x384xf32, #tpu.memory_space<vmem>>, %arg6: memref<4x2x128xbf16, #tpu.memory_space<vmem>>, %arg7: memref<2x128xf32, #tpu.memory_space<vmem>>, %arg8: memref<2x128xf32, #tpu.memory_space<vmem>>) attributes {dimension_semantics = [#tpu.dimension_semantics<parallel>, #tpu.dimension_semantics<arbitrary>], iteration_bounds = array<i64: 1, 2>, scalar_prefetch = 0 : i64, scratch_operands = 1 : i64, tpu.core_type = #tpu.core_type<tc>, window_params = [{transform_indices = @transform_0, window_bounds = array<i64: 4, 2, 384>}, {transform_indices = @transform_1, window_bounds = array<i64: 2, 128>}, {pipeline_mode = #tpu.pipeline_mode<synchronous>, transform_indices = @transform_2, window_bounds = array<i64: 128, 384>}, {pipeline_mode = #tpu.pipeline_mode<synchronous>, transform_indices = @transform_3, window_bounds = array<i64: 1, 384>}, {transform_indices = @transform_4, window_bounds = array<i64: 4, 2, 128>}, {transform_indices = @transform_5, window_bounds = array<i64: 2, 128>}]} {
    %c0_i32 = arith.constant 0 : i32
    %0 = arith.cmpi eq, %arg1, %c0_i32 : i32
    %1 = arith.extui %0 : i1 to i32
    %c0_i32_0 = arith.constant 0 : i32
    %2 = arith.cmpi ne, %1, %c0_i32_0 : i32
    scf.if %2 {
      %c0_38 = arith.constant 0 : index
      %c0_39 = arith.constant 0 : index
      %166 = vector.load %arg3[%c0_38, %c0_39] : memref<2x128xf32, #tpu.memory_space<vmem>>, vector<2x128xf32>
      %c0_40 = arith.constant 0 : index
      %c0_41 = arith.constant 0 : index
      %167 = vector.load %arg8[%c0_40, %c0_41] : memref<2x128xf32, #tpu.memory_space<vmem>>, vector<2x128xf32>
      tpu.vector_store %arg8[%c0_40, %c0_41], %166 {strides = array<i32>} : memref<2x128xf32, #tpu.memory_space<vmem>>, vector<2x128xf32>,
    } else {
    }
    %c0 = arith.constant 0 : index
    %c0_1 = arith.constant 0 : index
    %3 = vector.load %arg4[%c0, %c0_1] : memref<128x384xbf16, #tpu.memory_space<vmem>>, vector<128x384xbf16>
    %c0_2 = arith.constant 0 : index
    %c0_3 = arith.constant 0 : index
    %4 = vector.load %arg5[%c0_2, %c0_3] : memref<1x384xf32, #tpu.memory_space<vmem>>, vector<1x384xf32>
    %c0_4 = arith.constant 0 : index
    %c0_5 = arith.constant 0 : index
    %5 = vector.load %arg8[%c0_4, %c0_5] : memref<2x128xf32, #tpu.memory_space<vmem>>, vector<2x128xf32>
    %c0_i32_6 = arith.constant 0 : i32
    %6 = arith.index_cast %c0_i32_6 : i32 to index
    %c0_7 = arith.constant 0 : index
    %c0_8 = arith.constant 0 : index
    %7 = vector.load %arg2[%6, %c0_7, %c0_8] : memref<4x2x384xbf16, #tpu.memory_space<vmem>>, vector<1x2x384xbf16>
    %8 = vector.shape_cast %7 : vector<1x2x384xbf16> to vector<2x384xbf16>
    %9 = arith.truncf %5 : vector<2x128xf32> to vector<2x128xbf16>
    %cst = arith.constant dense<0.000000e+00> : vector<2x384xf32>
    %10 = tpu.matmul %9, %3, %cst {dimension_numbers = #tpu.dot_dimension_numbers<[1], [0], [0], [1], [0, 0, 1, 1], [], []>} : vector<2x128xbf16>, vector<128x384xbf16>, vector<2x384xf32> -> vector<2x384xf32>
    %11 = vector.broadcast %4 : vector<1x384xf32> to vector<2x384xf32>
    %12 = arith.addf %10, %11 : vector<2x384xf32>
    %13 = vector.extract_strided_slice %8 {offsets = [0, 0], sizes = [2, 128], strides = [1, 1]} : vector<2x384xbf16> to vector<2x128xbf16>
    %14 = vector.extract_strided_slice %12 {offsets = [0, 0], sizes = [2, 128], strides = [1, 1]} : vector<2x384xf32> to vector<2x128xf32>
    %15 = arith.extf %13 : vector<2x128xbf16> to vector<2x128xf32>
    %16 = arith.addf %15, %14 : vector<2x128xf32>
    %17 = arith.negf %16 : vector<2x128xf32>
    %18 = math.exp %17 : vector<2x128xf32>
    %cst_9 = arith.constant 1.000000e+00 : f32
    %19 = vector.broadcast %cst_9 : f32 to vector<2x128xf32>
    %20 = arith.addf %19, %18 : vector<2x128xf32>
    %21 = arith.divf %19, %20 : vector<2x128xf32>
    %22 = vector.extract_strided_slice %8 {offsets = [0, 128], sizes = [2, 128], strides = [1, 1]} : vector<2x384xbf16> to vector<2x128xbf16>
    %23 = vector.extract_strided_slice %12 {offsets = [0, 128], sizes = [2, 128], strides = [1, 1]} : vector<2x384xf32> to vector<2x128xf32>
    %24 = arith.extf %22 : vector<2x128xbf16> to vector<2x128xf32>
    %25 = arith.addf %24, %23 : vector<2x128xf32>
    %26 = arith.negf %25 : vector<2x128xf32>
    %27 = math.exp %26 : vector<2x128xf32>
    %cst_10 = arith.constant 1.000000e+00 : f32
    %28 = vector.broadcast %cst_10 : f32 to vector<2x128xf32>
    %29 = arith.addf %28, %27 : vector<2x128xf32>
    %30 = arith.divf %28, %29 : vector<2x128xf32>
    %31 = vector.extract_strided_slice %8 {offsets = [0, 256], sizes = [2, 128], strides = [1, 1]} : vector<2x384xbf16> to vector<2x128xbf16>
    %32 = vector.extract_strided_slice %12 {offsets = [0, 256], sizes = [2, 128], strides = [1, 1]} : vector<2x384xf32> to vector<2x128xf32>
    %33 = arith.mulf %21, %32 : vector<2x128xf32>
    %34 = arith.extf %31 : vector<2x128xbf16> to vector<2x128xf32>
    %35 = arith.addf %34, %33 : vector<2x128xf32>
    %36 = math.tanh %35 : vector<2x128xf32>
    %37 = arith.subf %5, %36 : vector<2x128xf32>
    %38 = arith.mulf %30, %37 : vector<2x128xf32>
    %39 = arith.addf %36, %38 : vector<2x128xf32>
    %40 = arith.truncf %39 : vector<2x128xf32> to vector<2x128xbf16>
    %41 = arith.index_cast %c0_i32_6 : i32 to index
    %c0_11 = arith.constant 0 : index
    %c0_12 = arith.constant 0 : index
    %42 = vector.load %arg6[%41, %c0_11, %c0_12] : memref<4x2x128xbf16, #tpu.memory_space<vmem>>, vector<1x2x128xbf16>
    %43 = vector.shape_cast %42 : vector<1x2x128xbf16> to vector<2x128xbf16>
    %44 = vector.shape_cast %40 : vector<2x128xbf16> to vector<1x2x128xbf16>
    tpu.vector_store %arg6[%41, %c0_11, %c0_12], %44 {strides = array<i32>} : memref<4x2x128xbf16, #tpu.memory_space<vmem>>, vector<1x2x128xbf16>,
    %c1_i32 = arith.constant 1 : i32
    %45 = arith.index_cast %c1_i32 : i32 to index
    %c0_13 = arith.constant 0 : index
    %c0_14 = arith.constant 0 : index
    %46 = vector.load %arg2[%45, %c0_13, %c0_14] : memref<4x2x384xbf16, #tpu.memory_space<vmem>>, vector<1x2x384xbf16>
    %47 = vector.shape_cast %46 : vector<1x2x384xbf16> to vector<2x384xbf16>
    %48 = arith.truncf %39 : vector<2x128xf32> to vector<2x128xbf16>
    %cst_15 = arith.constant dense<0.000000e+00> : vector<2x384xf32>
    %49 = tpu.matmul %48, %3, %cst_15 {dimension_numbers = #tpu.dot_dimension_numbers<[1], [0], [0], [1], [0, 0, 1, 1], [], []>} : vector<2x128xbf16>, vector<128x384xbf16>, vector<2x384xf32> -> vector<2x384xf32>
    %50 = vector.broadcast %4 : vector<1x384xf32> to vector<2x384xf32>
    %51 = arith.addf %49, %50 : vector<2x384xf32>
    %52 = vector.extract_strided_slice %47 {offsets = [0, 0], sizes = [2, 128], strides = [1, 1]} : vector<2x384xbf16> to vector<2x128xbf16>
    %53 = vector.extract_strided_slice %51 {offsets = [0, 0], sizes = [2, 128], strides = [1, 1]} : vector<2x384xf32> to vector<2x128xf32>
    %54 = arith.extf %52 : vector<2x128xbf16> to vector<2x128xf32>
    %55 = arith.addf %54, %53 : vector<2x128xf32>
    %56 = arith.negf %55 : vector<2x128xf32>
    %57 = math.exp %56 : vector<2x128xf32>
    %cst_16 = arith.constant 1.000000e+00 : f32
    %58 = vector.broadcast %cst_16 : f32 to vector<2x128xf32>
    %59 = arith.addf %58, %57 : vector<2x128xf32>
    %60 = arith.divf %58, %59 : vector<2x128xf32>
    %61 = vector.extract_strided_slice %47 {offsets = [0, 128], sizes = [2, 128], strides = [1, 1]} : vector<2x384xbf16> to vector<2x128xbf16>
    %62 = vector.extract_strided_slice %51 {offsets = [0, 128], sizes = [2, 128], strides = [1, 1]} : vector<2x384xf32> to vector<2x128xf32>
    %63 = arith.extf %61 : vector<2x128xbf16> to vector<2x128xf32>
    %64 = arith.addf %63, %62 : vector<2x128xf32>
    %65 = arith.negf %64 : vector<2x128xf32>
    %66 = math.exp %65 : vector<2x128xf32>
    %cst_17 = arith.constant 1.000000e+00 : f32
    %67 = vector.broadcast %cst_17 : f32 to vector<2x128xf32>
    %68 = arith.addf %67, %66 : vector<2x128xf32>
    %69 = arith.divf %67, %68 : vector<2x128xf32>
    %70 = vector.extract_strided_slice %47 {offsets = [0, 256], sizes = [2, 128], strides = [1, 1]} : vector<2x384xbf16> to vector<2x128xbf16>
    %71 = vector.extract_strided_slice %51 {offsets = [0, 256], sizes = [2, 128], strides = [1, 1]} : vector<2x384xf32> to vector<2x128xf32>
    %72 = arith.mulf %60, %71 : vector<2x128xf32>
    %73 = arith.extf %70 : vector<2x128xbf16> to vector<2x128xf32>
    %74 = arith.addf %73, %72 : vector<2x128xf32>
    %75 = math.tanh %74 : vector<2x128xf32>
    %76 = arith.subf %39, %75 : vector<2x128xf32>
    %77 = arith.mulf %69, %76 : vector<2x128xf32>
    %78 = arith.addf %75, %77 : vector<2x128xf32>
    %79 = arith.truncf %78 : vector<2x128xf32> to vector<2x128xbf16>
    %80 = arith.index_cast %c1_i32 : i32 to index
    %c0_18 = arith.constant 0 : index
    %c0_19 = arith.constant 0 : index
    %81 = vector.load %arg6[%80, %c0_18, %c0_19] : memref<4x2x128xbf16, #tpu.memory_space<vmem>>, vector<1x2x128xbf16>
    %82 = vector.shape_cast %81 : vector<1x2x128xbf16> to vector<2x128xbf16>
    %83 = vector.shape_cast %79 : vector<2x128xbf16> to vector<1x2x128xbf16>
    tpu.vector_store %arg6[%80, %c0_18, %c0_19], %83 {strides = array<i32>} : memref<4x2x128xbf16, #tpu.memory_space<vmem>>, vector<1x2x128xbf16>,
    %c2_i32 = arith.constant 2 : i32
    %84 = arith.index_cast %c2_i32 : i32 to index
    %c0_20 = arith.constant 0 : index
    %c0_21 = arith.constant 0 : index
    %85 = vector.load %arg2[%84, %c0_20, %c0_21] : memref<4x2x384xbf16, #tpu.memory_space<vmem>>, vector<1x2x384xbf16>
    %86 = vector.shape_cast %85 : vector<1x2x384xbf16> to vector<2x384xbf16>
    %87 = arith.truncf %78 : vector<2x128xf32> to vector<2x128xbf16>
    %cst_22 = arith.constant dense<0.000000e+00> : vector<2x384xf32>
    %88 = tpu.matmul %87, %3, %cst_22 {dimension_numbers = #tpu.dot_dimension_numbers<[1], [0], [0], [1], [0, 0, 1, 1], [], []>} : vector<2x128xbf16>, vector<128x384xbf16>, vector<2x384xf32> -> vector<2x384xf32>
    %89 = vector.broadcast %4 : vector<1x384xf32> to vector<2x384xf32>
    %90 = arith.addf %88, %89 : vector<2x384xf32>
    %91 = vector.extract_strided_slice %86 {offsets = [0, 0], sizes = [2, 128], strides = [1, 1]} : vector<2x384xbf16> to vector<2x128xbf16>
    %92 = vector.extract_strided_slice %90 {offsets = [0, 0], sizes = [2, 128], strides = [1, 1]} : vector<2x384xf32> to vector<2x128xf32>
    %93 = arith.extf %91 : vector<2x128xbf16> to vector<2x128xf32>
    %94 = arith.addf %93, %92 : vector<2x128xf32>
    %95 = arith.negf %94 : vector<2x128xf32>
    %96 = math.exp %95 : vector<2x128xf32>
    %cst_23 = arith.constant 1.000000e+00 : f32
    %97 = vector.broadcast %cst_23 : f32 to vector<2x128xf32>
    %98 = arith.addf %97, %96 : vector<2x128xf32>
    %99 = arith.divf %97, %98 : vector<2x128xf32>
    %100 = vector.extract_strided_slice %86 {offsets = [0, 128], sizes = [2, 128], strides = [1, 1]} : vector<2x384xbf16> to vector<2x128xbf16>
    %101 = vector.extract_strided_slice %90 {offsets = [0, 128], sizes = [2, 128], strides = [1, 1]} : vector<2x384xf32> to vector<2x128xf32>
    %102 = arith.extf %100 : vector<2x128xbf16> to vector<2x128xf32>
    %103 = arith.addf %102, %101 : vector<2x128xf32>
    %104 = arith.negf %103 : vector<2x128xf32>
    %105 = math.exp %104 : vector<2x128xf32>
    %cst_24 = arith.constant 1.000000e+00 : f32
    %106 = vector.broadcast %cst_24 : f32 to vector<2x128xf32>
    %107 = arith.addf %106, %105 : vector<2x128xf32>
    %108 = arith.divf %106, %107 : vector<2x128xf32>
    %109 = vector.extract_strided_slice %86 {offsets = [0, 256], sizes = [2, 128], strides = [1, 1]} : vector<2x384xbf16> to vector<2x128xbf16>
    %110 = vector.extract_strided_slice %90 {offsets = [0, 256], sizes = [2, 128], strides = [1, 1]} : vector<2x384xf32> to vector<2x128xf32>
    %111 = arith.mulf %99, %110 : vector<2x128xf32>
    %112 = arith.extf %109 : vector<2x128xbf16> to vector<2x128xf32>
    %113 = arith.addf %112, %111 : vector<2x128xf32>
    %114 = math.tanh %113 : vector<2x128xf32>
    %115 = arith.subf %78, %114 : vector<2x128xf32>
    %116 = arith.mulf %108, %115 : vector<2x128xf32>
    %117 = arith.addf %114, %116 : vector<2x128xf32>
    %118 = arith.truncf %117 : vector<2x128xf32> to vector<2x128xbf16>
    %119 = arith.index_cast %c2_i32 : i32 to index
    %c0_25 = arith.constant 0 : index
    %c0_26 = arith.constant 0 : index
    %120 = vector.load %arg6[%119, %c0_25, %c0_26] : memref<4x2x128xbf16, #tpu.memory_space<vmem>>, vector<1x2x128xbf16>
    %121 = vector.shape_cast %120 : vector<1x2x128xbf16> to vector<2x128xbf16>
    %122 = vector.shape_cast %118 : vector<2x128xbf16> to vector<1x2x128xbf16>
    tpu.vector_store %arg6[%119, %c0_25, %c0_26], %122 {strides = array<i32>} : memref<4x2x128xbf16, #tpu.memory_space<vmem>>, vector<1x2x128xbf16>,
    %c3_i32 = arith.constant 3 : i32
    %123 = arith.index_cast %c3_i32 : i32 to index
    %c0_27 = arith.constant 0 : index
    %c0_28 = arith.constant 0 : index
    %124 = vector.load %arg2[%123, %c0_27, %c0_28] : memref<4x2x384xbf16, #tpu.memory_space<vmem>>, vector<1x2x384xbf16>
    %125 = vector.shape_cast %124 : vector<1x2x384xbf16> to vector<2x384xbf16>
    %126 = arith.truncf %117 : vector<2x128xf32> to vector<2x128xbf16>
    %cst_29 = arith.constant dense<0.000000e+00> : vector<2x384xf32>
    %127 = tpu.matmul %126, %3, %cst_29 {dimension_numbers = #tpu.dot_dimension_numbers<[1], [0], [0], [1], [0, 0, 1, 1], [], []>} : vector<2x128xbf16>, vector<128x384xbf16>, vector<2x384xf32> -> vector<2x384xf32>
    %128 = vector.broadcast %4 : vector<1x384xf32> to vector<2x384xf32>
    %129 = arith.addf %127, %128 : vector<2x384xf32>
    %130 = vector.extract_strided_slice %125 {offsets = [0, 0], sizes = [2, 128], strides = [1, 1]} : vector<2x384xbf16> to vector<2x128xbf16>
    %131 = vector.extract_strided_slice %129 {offsets = [0, 0], sizes = [2, 128], strides = [1, 1]} : vector<2x384xf32> to vector<2x128xf32>
    %132 = arith.extf %130 : vector<2x128xbf16> to vector<2x128xf32>
    %133 = arith.addf %132, %131 : vector<2x128xf32>
    %134 = arith.negf %133 : vector<2x128xf32>
    %135 = math.exp %134 : vector<2x128xf32>
    %cst_30 = arith.constant 1.000000e+00 : f32
    %136 = vector.broadcast %cst_30 : f32 to vector<2x128xf32>
    %137 = arith.addf %136, %135 : vector<2x128xf32>
    %138 = arith.divf %136, %137 : vector<2x128xf32>
    %139 = vector.extract_strided_slice %125 {offsets = [0, 128], sizes = [2, 128], strides = [1, 1]} : vector<2x384xbf16> to vector<2x128xbf16>
    %140 = vector.extract_strided_slice %129 {offsets = [0, 128], sizes = [2, 128], strides = [1, 1]} : vector<2x384xf32> to vector<2x128xf32>
    %141 = arith.extf %139 : vector<2x128xbf16> to vector<2x128xf32>
    %142 = arith.addf %141, %140 : vector<2x128xf32>
    %143 = arith.negf %142 : vector<2x128xf32>
    %144 = math.exp %143 : vector<2x128xf32>
    %cst_31 = arith.constant 1.000000e+00 : f32
    %145 = vector.broadcast %cst_31 : f32 to vector<2x128xf32>
    %146 = arith.addf %145, %144 : vector<2x128xf32>
    %147 = arith.divf %145, %146 : vector<2x128xf32>
    %148 = vector.extract_strided_slice %125 {offsets = [0, 256], sizes = [2, 128], strides = [1, 1]} : vector<2x384xbf16> to vector<2x128xbf16>
    %149 = vector.extract_strided_slice %129 {offsets = [0, 256], sizes = [2, 128], strides = [1, 1]} : vector<2x384xf32> to vector<2x128xf32>
    %150 = arith.mulf %138, %149 : vector<2x128xf32>
    %151 = arith.extf %148 : vector<2x128xbf16> to vector<2x128xf32>
    %152 = arith.addf %151, %150 : vector<2x128xf32>
    %153 = math.tanh %152 : vector<2x128xf32>
    %154 = arith.subf %117, %153 : vector<2x128xf32>
    %155 = arith.mulf %147, %154 : vector<2x128xf32>
    %156 = arith.addf %153, %155 : vector<2x128xf32>
    %157 = arith.truncf %156 : vector<2x128xf32> to vector<2x128xbf16>
    %158 = arith.index_cast %c3_i32 : i32 to index
    %c0_32 = arith.constant 0 : index
    %c0_33 = arith.constant 0 : index
    %159 = vector.load %arg6[%158, %c0_32, %c0_33] : memref<4x2x128xbf16, #tpu.memory_space<vmem>>, vector<1x2x128xbf16>
    %160 = vector.shape_cast %159 : vector<1x2x128xbf16> to vector<2x128xbf16>
    %161 = vector.shape_cast %157 : vector<2x128xbf16> to vector<1x2x128xbf16>
    tpu.vector_store %arg6[%158, %c0_32, %c0_33], %161 {strides = array<i32>} : memref<4x2x128xbf16, #tpu.memory_space<vmem>>, vector<1x2x128xbf16>,
    %c4_i32 = arith.constant 4 : i32
    %c0_34 = arith.constant 0 : index
    %c0_35 = arith.constant 0 : index
    %162 = vector.load %arg8[%c0_34, %c0_35] : memref<2x128xf32, #tpu.memory_space<vmem>>, vector<2x128xf32>
    tpu.vector_store %arg8[%c0_34, %c0_35], %156 {strides = array<i32>} : memref<2x128xf32, #tpu.memory_space<vmem>>, vector<2x128xf32>,
    %c1_i32_36 = arith.constant 1 : i32
    %163 = arith.cmpi eq, %arg1, %c1_i32_36 : i32
    %164 = arith.extui %163 : i1 to i32
    %c0_i32_37 = arith.constant 0 : i32
    %165 = arith.cmpi ne, %164, %c0_i32_37 : i32
    scf.if %165 {
      %c0_38 = arith.constant 0 : index
      %c0_39 = arith.constant 0 : index
      %166 = vector.load %arg7[%c0_38, %c0_39] : memref<2x128xf32, #tpu.memory_space<vmem>>, vector<2x128xf32>
      tpu.vector_store %arg7[%c0_38, %c0_39], %156 {strides = array<i32>} : memref<2x128xf32, #tpu.memory_space<vmem>>, vector<2x128xf32>,
    } else {
    }
    return
  }
  func.func @transform_0(%arg0: i32, %arg1: i32) -> (i32, i32, i32) {
    %c0_i32 = arith.constant 0 : i32
    %c0_i32_0 = arith.constant 0 : i32
    return %arg1, %arg0, %c0_i32 : i32, i32, i32
  }
  func.func @transform_1(%arg0: i32, %arg1: i32) -> (i32, i32) {
    %c0_i32 = arith.constant 0 : i32
    %c0_i32_0 = arith.constant 0 : i32
    return %arg0, %c0_i32 : i32, i32
  }
  func.func @transform_2(%arg0: i32, %arg1: i32) -> (i32, i32) {
    %c0_i32 = arith.constant 0 : i32
    %c0_i32_0 = arith.constant 0 : i32
    %c0_i32_1 = arith.constant 0 : i32
    return %c0_i32, %c0_i32_0 : i32, i32
  }
  func.func @transform_3(%arg0: i32, %arg1: i32) -> (i32, i32) {
    %c0_i32 = arith.constant 0 : i32
    %c0_i32_0 = arith.constant 0 : i32
    %c0_i32_1 = arith.constant 0 : i32
    return %c0_i32, %c0_i32_0 : i32, i32
  }
  func.func @transform_4(%arg0: i32, %arg1: i32) -> (i32, i32, i32) {
    %c0_i32 = arith.constant 0 : i32
    %c0_i32_0 = arith.constant 0 : i32
    return %arg1, %arg0, %c0_i32 : i32, i32, i32
  }
  func.func @transform_5(%arg0: i32, %arg1: i32) -> (i32, i32) {
    %c0_i32 = arith.constant 0 : i32
    %c0_i32_0 = arith.constant 0 : i32
    return %arg0, %c0_i32 : i32, i32
  }
}

module attributes {stable_mosaic.version = 11 : i64} {
  func.func @attn_kernel(%arg0: i32, %arg1: i32, %arg2: memref<2x10x128xbf16, #tpu.memory_space<vmem>>, %arg3: memref<2x16x128xbf16, #tpu.memory_space<vmem>>, %arg4: memref<256x128xbf16, #tpu.memory_space<vmem>>, %arg5: memref<1x128xf32, #tpu.memory_space<vmem>>, %arg6: memref<32x128xf32, #tpu.memory_space<vmem>>, %arg7: memref<2x16x10xf32, #tpu.memory_space<vmem>>, %arg8: memref<2x16x128xbf16, #tpu.memory_space<vmem>>) attributes {dimension_semantics = [#tpu.dimension_semantics<parallel>, #tpu.dimension_semantics<arbitrary>], iteration_bounds = array<i64: 1, 1>, scalar_prefetch = 0 : i64, scratch_operands = 1 : i64, tpu.core_type = #tpu.core_type<tc>, window_params = [{transform_indices = @transform_0, window_bounds = array<i64: 2, 10, 128>}, {transform_indices = @transform_1, window_bounds = array<i64: 2, 16, 128>}, {transform_indices = @transform_2, window_bounds = array<i64: 256, 128>}, {transform_indices = @transform_3, window_bounds = array<i64: 1, 128>}, {transform_indices = @transform_4, window_bounds = array<i64: 32, 128>}, {transform_indices = @transform_5, window_bounds = array<i64: 2, 16, 10>}]} {
    %c0_i32 = arith.constant 0 : i32
    %0 = arith.cmpi eq, %arg1, %c0_i32 : i32
    %1 = arith.extui %0 : i1 to i32
    %c0_i32_0 = arith.constant 0 : i32
    %2 = arith.cmpi ne, %1, %c0_i32_0 : i32
    scf.if %2 {
      %c0_14 = arith.constant 0 : index
      %c0_15 = arith.constant 0 : index
      %c0_16 = arith.constant 0 : index
      %16 = vector.load %arg2[%c0_14, %c0_15, %c0_16] : memref<2x10x128xbf16, #tpu.memory_space<vmem>>, vector<2x10x128xbf16>
      %c0_17 = arith.constant 0 : index
      %c0_18 = arith.constant 0 : index
      %c0_19 = arith.constant 0 : index
      %17 = vector.load %arg3[%c0_17, %c0_18, %c0_19] : memref<2x16x128xbf16, #tpu.memory_space<vmem>>, vector<2x16x128xbf16>
      "tpu.trace_start"() <{level = 10 : i32, message = "btd,bed->bte"}> : () -> ()
      %cst_20 = arith.constant dense<0.000000e+00> : vector<2x16x10xf32>
      %18 = tpu.matmul %17, %16, %cst_20 {dimension_numbers = #tpu.dot_dimension_numbers<[2], [2], [1], [1], [0, 0, 0, 1, 1, 1], [0], [0]>} : vector<2x16x128xbf16>, vector<2x10x128xbf16>, vector<2x16x10xf32> -> vector<2x16x10xf32>
      "tpu.trace_stop"() : () -> ()
      %cst_21 = arith.constant dense<0xFF800000> : vector<2x16xf32>
      %19 = vector.multi_reduction <maximumf>, %18, %cst_21 [2] : vector<2x16x10xf32> to vector<2x16xf32>
      %20 = vector.shape_cast %19 : vector<2x16xf32> to vector<2x16x1xf32>
      %21 = vector.broadcast %20 : vector<2x16x1xf32> to vector<2x16x10xf32>
      %22 = arith.subf %18, %21 : vector<2x16x10xf32>
      %23 = math.exp %22 : vector<2x16x10xf32>
      %cst_22 = arith.constant dense<0.000000e+00> : vector<2x16xf32>
      %24 = vector.multi_reduction <add>, %23, %cst_22 [2] : vector<2x16x10xf32> to vector<2x16xf32>
      %25 = vector.shape_cast %24 : vector<2x16xf32> to vector<2x16x1xf32>
      %26 = tpu.reciprocal %25 {approx = true} : vector<2x16x1xf32> -> vector<2x16x1xf32>
      %27 = vector.broadcast %26 : vector<2x16x1xf32> to vector<2x16x10xf32>
      %28 = arith.mulf %23, %27 : vector<2x16x10xf32>
      %c0_23 = arith.constant 0 : index
      %c0_24 = arith.constant 0 : index
      %c0_25 = arith.constant 0 : index
      %29 = vector.load %arg7[%c0_23, %c0_24, %c0_25] : memref<2x16x10xf32, #tpu.memory_space<vmem>>, vector<2x16x10xf32>
      tpu.vector_store %arg7[%c0_23, %c0_24, %c0_25], %28 {strides = array<i32>} : memref<2x16x10xf32, #tpu.memory_space<vmem>>, vector<2x16x10xf32>,
      %30 = arith.truncf %28 : vector<2x16x10xf32> to vector<2x16x10xbf16>
      "tpu.trace_start"() <{level = 10 : i32, message = "bte,bed->btd"}> : () -> ()
      %cst_26 = arith.constant dense<0.000000e+00> : vector<2x16x128xf32>
      %31 = tpu.matmul %30, %16, %cst_26 {dimension_numbers = #tpu.dot_dimension_numbers<[2], [1], [1], [2], [0, 0, 0, 1, 1, 2], [0], [0]>} : vector<2x16x10xbf16>, vector<2x10x128xbf16>, vector<2x16x128xf32> -> vector<2x16x128xf32>
      "tpu.trace_stop"() : () -> ()
      %32 = arith.truncf %31 : vector<2x16x128xf32> to vector<2x16x128xbf16>
      %c0_27 = arith.constant 0 : index
      %c0_28 = arith.constant 0 : index
      %c0_29 = arith.constant 0 : index
      %33 = vector.load %arg8[%c0_27, %c0_28, %c0_29] : memref<2x16x128xbf16, #tpu.memory_space<vmem>>, vector<2x16x128xbf16>
      tpu.vector_store %arg8[%c0_27, %c0_28, %c0_29], %32 {strides = array<i32>} : memref<2x16x128xbf16, #tpu.memory_space<vmem>>, vector<2x16x128xbf16>,
    } else {
    }
    %c0 = arith.constant 0 : index
    %c0_1 = arith.constant 0 : index
    %c0_2 = arith.constant 0 : index
    %3 = vector.load %arg3[%c0, %c0_1, %c0_2] : memref<2x16x128xbf16, #tpu.memory_space<vmem>>, vector<2x16x128xbf16>
    %4 = vector.shape_cast %3 : vector<2x16x128xbf16> to vector<32x128xbf16>
    %c0_3 = arith.constant 0 : index
    %c0_4 = arith.constant 0 : index
    %c0_5 = arith.constant 0 : index
    %5 = vector.load %arg8[%c0_3, %c0_4, %c0_5] : memref<2x16x128xbf16, #tpu.memory_space<vmem>>, vector<2x16x128xbf16>
    %6 = vector.shape_cast %5 : vector<2x16x128xbf16> to vector<32x128xbf16>
    %c0_6 = arith.constant 0 : index
    %c0_7 = arith.constant 0 : index
    %7 = vector.load %arg4[%c0_6, %c0_7] : memref<256x128xbf16, #tpu.memory_space<vmem>>, vector<128x128xbf16>
    %cst = arith.constant dense<0.000000e+00> : vector<32x128xf32>
    %8 = tpu.matmul %4, %7, %cst {dimension_numbers = #tpu.dot_dimension_numbers<[1], [0], [0], [1], [0, 0, 1, 1], [], []>} : vector<32x128xbf16>, vector<128x128xbf16>, vector<32x128xf32> -> vector<32x128xf32>
    %c128 = arith.constant 128 : index
    %c0_8 = arith.constant 0 : index
    %9 = vector.load %arg4[%c128, %c0_8] : memref<256x128xbf16, #tpu.memory_space<vmem>>, vector<128x128xbf16>
    %cst_9 = arith.constant dense<0.000000e+00> : vector<32x128xf32>
    %10 = tpu.matmul %6, %9, %cst_9 {dimension_numbers = #tpu.dot_dimension_numbers<[1], [0], [0], [1], [0, 0, 1, 1], [], []>} : vector<32x128xbf16>, vector<128x128xbf16>, vector<32x128xf32> -> vector<32x128xf32>
    %11 = arith.addf %8, %10 : vector<32x128xf32>
    %c0_10 = arith.constant 0 : index
    %c0_11 = arith.constant 0 : index
    %12 = vector.load %arg5[%c0_10, %c0_11] : memref<1x128xf32, #tpu.memory_space<vmem>>, vector<1x128xf32>
    %13 = vector.broadcast %12 : vector<1x128xf32> to vector<32x128xf32>
    %14 = arith.addf %11, %13 : vector<32x128xf32>
    %c0_12 = arith.constant 0 : index
    %c0_13 = arith.constant 0 : index
    %15 = vector.load %arg6[%c0_12, %c0_13] : memref<32x128xf32, #tpu.memory_space<vmem>>, vector<32x128xf32>
    tpu.vector_store %arg6[%c0_12, %c0_13], %14 {strides = array<i32>} : memref<32x128xf32, #tpu.memory_space<vmem>>, vector<32x128xf32>,
    return
  }
  func.func @transform_0(%arg0: i32, %arg1: i32) -> (i32, i32, i32) {
    %c0_i32 = arith.constant 0 : i32
    %c0_i32_0 = arith.constant 0 : i32
    %c0_i32_1 = arith.constant 0 : i32
    return %arg0, %c0_i32, %c0_i32_0 : i32, i32, i32
  }
  func.func @transform_1(%arg0: i32, %arg1: i32) -> (i32, i32, i32) {
    %c0_i32 = arith.constant 0 : i32
    %c0_i32_0 = arith.constant 0 : i32
    %c0_i32_1 = arith.constant 0 : i32
    return %arg0, %c0_i32, %c0_i32_0 : i32, i32, i32
  }
  func.func @transform_2(%arg0: i32, %arg1: i32) -> (i32, i32) {
    %c0_i32 = arith.constant 0 : i32
    %c0_i32_0 = arith.constant 0 : i32
    return %c0_i32, %arg1 : i32, i32
  }
  func.func @transform_3(%arg0: i32, %arg1: i32) -> (i32, i32) {
    %c0_i32 = arith.constant 0 : i32
    %c0_i32_0 = arith.constant 0 : i32
    return %c0_i32, %arg1 : i32, i32
  }
  func.func @transform_4(%arg0: i32, %arg1: i32) -> (i32, i32) {
    %c0_i32 = arith.constant 0 : i32
    return %arg0, %arg1 : i32, i32
  }
  func.func @transform_5(%arg0: i32, %arg1: i32) -> (i32, i32, i32) {
    %c0_i32 = arith.constant 0 : i32
    %c0_i32_0 = arith.constant 0 : i32
    %c0_i32_1 = arith.constant 0 : i32
    return %arg0, %c0_i32, %c0_i32_0 : i32, i32, i32
  }
}

</mosaic_0001>

<llo_original>
// kernel: attention_decoder_forward.2
$region0: #{attention_decoder_forward.2}
  #allocation0 [shape = 'u32[]', space=smem, size = 0x4, offset = 0x4, fixed_abs, tag = 'smem constant byte address 0x4 - core index']
  #allocation1 [shape = 'u32[144,128]{1,0:T(1,128)}', space=vmem, size = 0x12000, scoped, tag = 'internal scratch']
  #allocation2 [shape = 'f32[2,128]{1,0:T(2,128)}', space=vmem, size = 0x400, scoped, tag = 'scratch operand']
  %s0 = inlined_call_operand.vmem [shape: bf16[8,2,384], index: 0, kind: input, shape index: {}]
  %s1 = inlined_call_operand.vmem [shape: f32[2,128], index: 1, kind: input, shape index: {}]
  %s2 = inlined_call_operand.vmem [shape: bf16[128,384], index: 2, kind: input, shape index: {}]
  %s3 = inlined_call_operand.vmem [shape: f32[1,384], index: 3, kind: input, shape index: {}]
  %s4 = inlined_call_operand.vmem [shape: bf16[8,2,128], index: 4, kind: output, shape index: {0}]
  %s5 = inlined_call_operand.vmem [shape: f32[2,128], index: 5, kind: output, shape index: {1}]
  %6 = xla_tuple %s4, %s5
  %s7 = sld [smem:[#allocation0]]
  $region65: #{attention_decoder_forward.2} parent=0
    _
  %s9 = ssub.s32 1, %s7
  %s10 = scalar_select 0, %s9, %s7
  loop: start=0, step=1, limit=4
  $region2: #{attention_decoder_forward.2} parent=0 // loop_pre_header
    _
  $region3: #{attention_decoder_forward.2} parent=0 // loop_header
    %s12 = sphi 0, %s16
    %p13 = scmp.ge.s32.totalorder %s12, 4
    %s19 = sphi 0, %s31
    %s20 = sphi 0, %s27
    %s21 = sphi 0, %s19
    %s22 = sphi 0, %s20
    %s23 = sphi 0, %s21
    %s24 = sphi 0, %s22
    %s36 = sphi 0, %s38
    %s39 = sphi 0, %s36
    %s40 = sphi 0, %s39
    %s56 = sphi 0, %s40
    %s62 = sphi 0, %s64
    %s65 = sphi 0, %s62
    %s66 = sphi 0, %s65
    %s82 = sphi 0, %s66
    %s86 = sphi 0, %s86
    %s88 = sphi 0, %s86
    %s89 = sphi 0, %s88
    %s103 = sphi 0, %s89
    %s107 = sphi 0, %s107
    %s109 = sphi 0, %s107
    %s110 = sphi 0, %s109
    %s124 = sphi 0, %s110
    %s132 = sphi 0, %s134
    %s135 = sphi 0, %s132
    %s136 = sphi 0, %s135
    %s152 = sphi 0, %s136
    %s158 = sphi 0, %s160
    %s161 = sphi 0, %s158
    %s162 = sphi 0, %s161
    %s178 = sphi 0, %s162
  $region4: #{attention_decoder_forward.2} parent=0 // loop_header_branch
    %15 = sbr.rel (%p13) target = $region8
  $region5: #{attention_decoder_forward.2} parent=0 // loop_body
    %s17 = ssub.s32 %s12, 1
    %s18 = ssub.s32 %s12, 2
    %s25 = sadd.s32 1, %s20
    %p26 = scmp.ge.s32.totalorder %s25, 2
    %s27 = scalar_select %p26, 0, %s25
    %s28 = sadd.s32 1, %s19
    %s29 = scalar_select %p26, %s28, %s19
    %p30 = scmp.ge.s32.totalorder %s29, 1
    %s31 = scalar_select %p30, 0, %s29
    %s32 = ssub.s32 %s20, %s27
    %s33 = ssub.s32 %s19, %s31
    %s34 = sor.u32 %s32, %s33
    %p35 = scmp.eq.s32.totalorder %s34, 0
    %s37 = sadd.s32 %s36, 1
    %s38 = scalar_select %p35, %s36, %s37
    %p41 = pneg %p35
    %p42 = scmp.eq.s32.totalorder %s12, 1
    %p43 = por %p41, %p42
    %p44 = scmp.ne.s32.totalorder %s36, %s39
    %p45 = scmp.eq.s32.totalorder %s12, 0
    %p46 = por %p44, %p45
    %p47 = scmp.ne.s32.totalorder %s36, %s39
    %p48 = scmp.eq.s32.totalorder %s17, 1
    %p49 = por %p47, %p48
    %p50 = scmp.ne.s32.totalorder %s39, %s40
    %p51 = scmp.eq.s32.totalorder %s17, 0
    %p52 = por %p50, %p51
    %p53 = scmp.ne.s32.totalorder %s39, %s40
    %p54 = scmp.eq.s32.totalorder %s18, 1
    %p55 = por %p53, %p54
    %p57 = scmp.ne.s32.totalorder %s40, %s56
    %p58 = scmp.eq.s32.totalorder %s18, 0
    %p59 = por %p57, %p58
    %s60 = ssub.s32 %s19, %s31
    %p61 = scmp.eq.s32.totalorder %s60, 0
    %s63 = sadd.s32 %s62, 1
    %s64 = scalar_select %p61, %s62, %s63
    %p67 = pneg %p61
    %p68 = scmp.eq.s32.totalorder %s12, 1
    %p69 = por %p67, %p68
    %p70 = scmp.ne.s32.totalorder %s62, %s65
    %p71 = scmp.eq.s32.totalorder %s12, 0
    %p72 = por %p70, %p71
    %p73 = scmp.ne.s32.totalorder %s62, %s65
    %p74 = scmp.eq.s32.totalorder %s17, 1
    %p75 = por %p73, %p74
    %p76 = scmp.ne.s32.totalorder %s65, %s66
    %p77 = scmp.eq.s32.totalorder %s17, 0
    %p78 = por %p76, %p77
    %p79 = scmp.ne.s32.totalorder %s65, %s66
    %p80 = scmp.eq.s32.totalorder %s18, 1
    %p81 = por %p79, %p80
    %p83 = scmp.ne.s32.totalorder %s66, %s82
    %p84 = scmp.eq.s32.totalorder %s18, 0
    %p85 = por %p83, %p84
    %s87 = sadd.s32 %s86, 1
    %p90 = scmp.eq.s32.totalorder %s12, 1
    %p91 = scmp.ne.s32.totalorder %s86, %s88
    %p92 = scmp.eq.s32.totalorder %s12, 0
    %p93 = por %p91, %p92
    %p94 = scmp.ne.s32.totalorder %s86, %s88
    %p95 = scmp.eq.s32.totalorder %s17, 1
    %p96 = por %p94, %p95
    %p97 = scmp.ne.s32.totalorder %s88, %s89
    %p98 = scmp.eq.s32.totalorder %s17, 0
    %p99 = por %p97, %p98
    %p100 = scmp.ne.s32.totalorder %s88, %s89
    %p101 = scmp.eq.s32.totalorder %s18, 1
    %p102 = por %p100, %p101
    %p104 = scmp.ne.s32.totalorder %s89, %s103
    %p105 = scmp.eq.s32.totalorder %s18, 0
    %p106 = por %p104, %p105
    %s108 = sadd.s32 %s107, 1
    %p111 = scmp.eq.s32.totalorder %s12, 1
    %p112 = scmp.ne.s32.totalorder %s107, %s109
    %p113 = scmp.eq.s32.totalorder %s12, 0
    %p114 = por %p112, %p113
    %p115 = scmp.ne.s32.totalorder %s107, %s109
    %p116 = scmp.eq.s32.totalorder %s17, 1
    %p117 = por %p115, %p116
    %p118 = scmp.ne.s32.totalorder %s109, %s110
    %p119 = scmp.eq.s32.totalorder %s17, 0
    %p120 = por %p118, %p119
    %p121 = scmp.ne.s32.totalorder %s109, %s110
    %p122 = scmp.eq.s32.totalorder %s18, 1
    %p123 = por %p121, %p122
    %p125 = scmp.ne.s32.totalorder %s110, %s124
    %p126 = scmp.eq.s32.totalorder %s18, 0
    %p127 = por %p125, %p126
    %s128 = ssub.s32 %s20, %s27
    %s129 = ssub.s32 %s19, %s31
    %s130 = sor.u32 %s128, %s129
    %p131 = scmp.eq.s32.totalorder %s130, 0
    %s133 = sadd.s32 %s132, 1
    %s134 = scalar_select %p131, %s132, %s133
    %p137 = pneg %p131
    %p138 = scmp.eq.s32.totalorder %s12, 1
    %p139 = por %p137, %p138
    %p140 = scmp.ne.s32.totalorder %s132, %s135
    %p141 = scmp.eq.s32.totalorder %s12, 0
    %p142 = por %p140, %p141
    %p143 = scmp.ne.s32.totalorder %s132, %s135
    %p144 = scmp.eq.s32.totalorder %s17, 1
    %p145 = por %p143, %p144
    %p146 = scmp.ne.s32.totalorder %s135, %s136
    %p147 = scmp.eq.s32.totalorder %s17, 0
    %p148 = por %p146, %p147
    %p149 = scmp.ne.s32.totalorder %s135, %s136
    %p150 = scmp.eq.s32.totalorder %s18, 1
    %p151 = por %p149, %p150
    %p153 = scmp.ne.s32.totalorder %s136, %s152
    %p154 = scmp.eq.s32.totalorder %s18, 0
    %p155 = por %p153, %p154
    %s156 = ssub.s32 %s19, %s31
    %p157 = scmp.eq.s32.totalorder %s156, 0
    %s159 = sadd.s32 %s158, 1
    %s160 = scalar_select %p157, %s158, %s159
    %p163 = pneg %p157
    %p164 = scmp.eq.s32.totalorder %s12, 1
    %p165 = por %p163, %p164
    %p166 = scmp.ne.s32.totalorder %s158, %s161
    %p167 = scmp.eq.s32.totalorder %s12, 0
    %p168 = por %p166, %p167
    %p169 = scmp.ne.s32.totalorder %s158, %s161
    %p170 = scmp.eq.s32.totalorder %s17, 1
    %p171 = por %p169, %p170
    %p172 = scmp.ne.s32.totalorder %s161, %s162
    %p173 = scmp.eq.s32.totalorder %s17, 0
    %p174 = por %p172, %p173
    %p175 = scmp.ne.s32.totalorder %s161, %s162
    %p176 = scmp.eq.s32.totalorder %s18, 1
    %p177 = por %p175, %p176
    %p179 = scmp.ne.s32.totalorder %s162, %s178
    %p180 = scmp.eq.s32.totalorder %s18, 0
    %p181 = por %p179, %p180
    %p182 = scmp.le.s32.totalorder 1, %s12
    %p183 = scmp.lt.s32.totalorder %s12, 3
    %p184 = pnand %p182, %p183
    %p185 = pneg %p184
    // Predicated region
    $region9: #{attention_decoder_forward.2} parent=5 // pred_check
      _
    $region10: #{attention_decoder_forward.2} parent=5 // pred_check_branch
      %187 = sbr.rel (%p184) target = $region12
    $region11: #{attention_decoder_forward.2} parent=5 // pred_region
      %s188 = ssub.s32 %s12, 1
      // Predicated region
      $region13: #{attention_decoder_forward.2} parent=11 // pred_check
        %p189 = pneg %p78
      $region14: #{attention_decoder_forward.2} parent=11 // pred_check_branch
        %191 = sbr.rel (%p189) target = $region16
      $region15: #{attention_decoder_forward.2} parent=11 // pred_region
        %p192 = scmp.lt.s32.totalorder %s21, 0
        %s193 = scalar_select %p192, %s21, 0
        %s194 = smul.addr %s193, 2
        %s195 = scalar_lea.vmem %s1, %s194
      $region16: #{attention_decoder_forward.2} parent=11 // pred_fallthru
        _
      // Predicated region
      $region17: #{attention_decoder_forward.2} parent=11 // pred_check
        %p196 = pneg %p99
      $region18: #{attention_decoder_forward.2} parent=11 // pred_check_branch
        %198 = sbr.rel (%p196) target = $region20
      $region19: #{attention_decoder_forward.2} parent=11 // pred_region
        _
      $region20: #{attention_decoder_forward.2} parent=11 // pred_fallthru
        _
      // Predicated region
      $region21: #{attention_decoder_forward.2} parent=11 // pred_check
        %p199 = pneg %p120
      $region22: #{attention_decoder_forward.2} parent=11 // pred_check_branch
        %201 = sbr.rel (%p199) target = $region24
      $region23: #{attention_decoder_forward.2} parent=11 // pred_region
        _
      $region24: #{attention_decoder_forward.2} parent=11 // pred_fallthru
        _
    $region12: #{attention_decoder_forward.2} parent=5 // pred_fallthru
      _
    %p202 = scmp.lt.s32.totalorder %s12, 2
    // Predicated region
    $region25: #{attention_decoder_forward.2} parent=5 // pred_check
      %p203 = pneg %p202
    $region26: #{attention_decoder_forward.2} parent=5 // pred_check_branch
      %205 = sbr.rel (%p203) target = $region28
    $region27: #{attention_decoder_forward.2} parent=5 // pred_region
      // Predicated region
      $region29: #{attention_decoder_forward.2} parent=27 // pred_check
        %p206 = pneg %p46
      $region30: #{attention_decoder_forward.2} parent=27 // pred_check_branch
        %208 = sbr.rel (%p206) target = $region32
      $region31: #{attention_decoder_forward.2} parent=27 // pred_region
        %s209 = smul.u32 4, %s20
        %p210 = scmp.lt.s32.totalorder %s209, 7
        %s211 = scalar_select %p210, %s209, 7
        %p212 = scmp.lt.s32.totalorder %s19, 0
        %s213 = scalar_select %p212, %s19, 0
        %s214 = smul.addr %s213, 3
        %s215 = smul.addr %s211, 3
        %s216 = sadd.s32 %s214, %s215
        %s217 = scalar_lea.vmem %s0, %s216
        %s218 = smul.u32 4, %s20
      $region32: #{attention_decoder_forward.2} parent=27 // pred_fallthru
        _
    $region28: #{attention_decoder_forward.2} parent=5 // pred_fallthru
      _
    %p219 = scmp.le.s32.totalorder 1, %s12
    %p220 = scmp.lt.s32.totalorder %s12, 3
    %p221 = pnand %p219, %p220
    %p222 = pneg %p221
    // Predicated region
    $region33: #{attention_decoder_forward.2} parent=5 // pred_check
      _
    $region34: #{attention_decoder_forward.2} parent=5 // pred_check_branch
      %224 = sbr.rel (%p221) target = $region36
    $region35: #{attention_decoder_forward.2} parent=5 // pred_region
      %s225 = ssub.s32 %s12, 1
      %s226 = smul.u32 4, %s22
      %p227 = scmp.lt.s32.totalorder %s226, 7
      %s228 = scalar_select %p227, %s226, 7
      %p229 = scmp.lt.s32.totalorder %s21, 0
      %s230 = scalar_select %p229, %s21, 0
      %s231 = smul.addr %s230, 3
      %s232 = smul.addr %s228, 3
      %s233 = sadd.s32 %s231, %s232
      %s234 = scalar_lea.vmem %s0, %s233
      %p235 = pneg %p52
      %p236 = pneg %p49
      %p237 = scmp.lt.s32.totalorder %s21, 0
      %s238 = scalar_select %p237, %s21, 0
      %s239 = smul.addr %s238, 2
      %s240 = scalar_lea.vmem %s1, %s239
      %p241 = pneg %p78
      %p242 = pneg %p75
      %p243 = pneg %p99
      %p244 = pneg %p96
      %p245 = pneg %p120
      %p246 = pneg %p117
      %p247 = pneg %p148
      %p248 = pneg %p145
      %s249 = smul.u32 4, %s22
      %p250 = scmp.lt.s32.totalorder %s249, 7
      %s251 = scalar_select %p250, %s249, 7
      %p252 = scmp.lt.s32.totalorder %s21, 0
      %s253 = scalar_select %p252, %s21, 0
      %s254 = sadd.s32 %s253, %s251
      %s255 = scalar_lea.vmem %s4, %s254
      %p256 = pneg %p174
      %p257 = pneg %p171
      %p258 = scmp.lt.s32.totalorder %s21, 0
      %s259 = scalar_select %p258, %s21, 0
      %s260 = smul.addr %s259, 2
      %s261 = scalar_lea.vmem %s5, %s260
      %s262 = smul.u32 4, %s22
      %p263 = scmp.lt.s32.totalorder %s262, 7
      %s264 = scalar_select %p263, %s262, 7
      %p265 = scmp.lt.s32.totalorder %s21, 0
      %s266 = scalar_select %p265, %s21, 0
      %s267 = smul.addr %s266, 3
      %s268 = smul.addr %s264, 3
      %s269 = sadd.s32 %s267, %s268
      %s270 = scalar_lea.vmem %s0, %s269
      %s271 = smul.u32 4, %s22
      %p272 = scmp.lt.s32.totalorder %s21, 0
      %s273 = scalar_select %p272, %s21, 0
      %s274 = smul.addr %s273, 2
      %s275 = scalar_lea.vmem %s1, %s274
      %s276 = smul.u32 4, %s22
      %p277 = scmp.lt.s32.totalorder %s276, 7
      %s278 = scalar_select %p277, %s276, 7
      %p279 = scmp.lt.s32.totalorder %s21, 0
      %s280 = scalar_select %p279, %s21, 0
      %s281 = sadd.s32 %s280, %s278
      %s282 = scalar_lea.vmem %s4, %s281
      %s283 = smul.u32 4, %s22
      %p284 = scmp.lt.s32.totalorder %s21, 0
      %s285 = scalar_select %p284, %s21, 0
      %s286 = smul.addr %s285, 2
      %s287 = scalar_lea.vmem %s5, %s286
      %p289 = scmp.eq.s32.totalorder %s22, 0
      // Predicated region
      $region37: #{attention_decoder_forward.2} parent=35 // pred_check
        %p290 = pneg %p289
      $region38: #{attention_decoder_forward.2} parent=35 // pred_check_branch
        %292 = sbr.rel (%p290) target = $region40
      $region39: #{attention_decoder_forward.2} parent=35 // pred_region
        %v293 = vld [vmem:[%s275] sm:$0x3]
        %294 = vst [vmem:[#allocation2] sm:$0x3] %v293
      $region40: #{attention_decoder_forward.2} parent=35 // pred_fallthru
        _
      %v295 = vld [vmem:[%s2] sm:$0xff]
      %v296 = vld [vmem:[%s2 + $0x8] sm:$0xf]
      %v297 = vld [vmem:[%s2 + $0xc] sm:$0xff]
      %v298 = vld [vmem:[%s2 + $0x14] sm:$0xf]
      %v299 = vld [vmem:[%s2 + $0x18] sm:$0xff]
      %v300 = vld [vmem:[%s2 + $0x20] sm:$0xf]
      %v301 = vld [vmem:[%s2 + $0x24] sm:$0xff]
      %v302 = vld [vmem:[%s2 + $0x2c] sm:$0xf]
      %v303 = vld [vmem:[%s2 + $0x30] sm:$0xff]
      %v304 = vld [vmem:[%s2 + $0x38] sm:$0xf]
      %v305 = vld [vmem:[%s2 + $0x3c] sm:$0xff]
      %v306 = vld [vmem:[%s2 + $0x44] sm:$0xf]
      %v307 = vld [vmem:[%s2 + $0x48] sm:$0xff]
      %v308 = vld [vmem:[%s2 + $0x50] sm:$0xf]
      %v309 = vld [vmem:[%s2 + $0x54] sm:$0xff]
      %v310 = vld [vmem:[%s2 + $0x5c] sm:$0xf]
      %v311 = vld [vmem:[%s2 + $0x60] sm:$0xff]
      %v312 = vld [vmem:[%s2 + $0x68] sm:$0xf]
      %v313 = vld [vmem:[%s2 + $0x6c] sm:$0xff]
      %v314 = vld [vmem:[%s2 + $0x74] sm:$0xf]
      %v315 = vld [vmem:[%s2 + $0x78] sm:$0xff]
      %v316 = vld [vmem:[%s2 + $0x80] sm:$0xf]
      %v317 = vld [vmem:[%s2 + $0x84] sm:$0xff]
      %v318 = vld [vmem:[%s2 + $0x8c] sm:$0xf]
      %v319 = vld [vmem:[%s2 + $0x90] sm:$0xff]
      %v320 = vld [vmem:[%s2 + $0x98] sm:$0xf]
      %v321 = vld [vmem:[%s2 + $0x9c] sm:$0xff]
      %v322 = vld [vmem:[%s2 + $0xa4] sm:$0xf]
      %v323 = vld [vmem:[%s2 + $0xa8] sm:$0xff]
      %v324 = vld [vmem:[%s2 + $0xb0] sm:$0xf]
      %v325 = vld [vmem:[%s2 + $0xb4] sm:$0xff]
      %v326 = vld [vmem:[%s2 + $0xbc] sm:$0xf]
      %v327 = vld [vmem:[%s3] sm:$0x7]
      %v328 = vld [vmem:[#allocation2] sm:$0x3]
      %v329 = vld [vmem:[%s270] sm:$0x7]
      %v330 = vpack.c.bf16 %v328, %v328
      %v332 = vlaneseq
      %v333 = vshrl.u32 %v332, 7
      %v334 = vsub.s32 0, %v333
      %v335 = vrot.slane %v327, %v334
      %v336 = vlaneseq
      %v337 = vshrl.u32 %v336, 7
      %v338 = vsub.s32 1, %v337
      %v339 = vrot.slane %v327, %v338
      %v340 = vlaneseq
      %v341 = vshrl.u32 %v340, 7
      %v342 = vsub.s32 2, %v341
      %v343 = vrot.slane %v327, %v342
      %v379 = vunpack.c.l.b16 %v295
      %v380 = vunpack.c.h.b16 %v295
      %v381 = vunpack.c.l.b16 %v296
      %v382 = vunpack.c.l.b16 %v297
      %v383 = vunpack.c.h.b16 %v297
      %v384 = vunpack.c.l.b16 %v298
      %v385 = vunpack.c.l.b16 %v299
      %v386 = vunpack.c.h.b16 %v299
      %v387 = vunpack.c.l.b16 %v300
      %v388 = vunpack.c.l.b16 %v301
      %v389 = vunpack.c.h.b16 %v301
      %v390 = vunpack.c.l.b16 %v302
      %v391 = vunpack.c.l.b16 %v303
      %v392 = vunpack.c.h.b16 %v303
      %v393 = vunpack.c.l.b16 %v304
      %v394 = vunpack.c.l.b16 %v305
      %v395 = vunpack.c.h.b16 %v305
      %v396 = vunpack.c.l.b16 %v306
      %v397 = vunpack.c.l.b16 %v307
      %v398 = vunpack.c.h.b16 %v307
      %v399 = vunpack.c.l.b16 %v308
      %v400 = vunpack.c.l.b16 %v309
      %v401 = vunpack.c.h.b16 %v309
      %v402 = vunpack.c.l.b16 %v310
      %v403 = vunpack.c.l.b16 %v311
      %v404 = vunpack.c.h.b16 %v311
      %v405 = vunpack.c.l.b16 %v312
      %v406 = vunpack.c.l.b16 %v313
      %v407 = vunpack.c.h.b16 %v313
      %v408 = vunpack.c.l.b16 %v314
      %v409 = vunpack.c.l.b16 %v315
      %v410 = vunpack.c.h.b16 %v315
      %v411 = vunpack.c.l.b16 %v316
      %v412 = vunpack.c.l.b16 %v317
      %v413 = vunpack.c.h.b16 %v317
      %v414 = vunpack.c.l.b16 %v318
      %v415 = vunpack.c.l.b16 %v319
      %v416 = vunpack.c.h.b16 %v319
      %v417 = vunpack.c.l.b16 %v320
      %v418 = vunpack.c.l.b16 %v321
      %v419 = vunpack.c.h.b16 %v321
      %v420 = vunpack.c.l.b16 %v322
      %v421 = vunpack.c.l.b16 %v323
      %v422 = vunpack.c.h.b16 %v323
      %v423 = vunpack.c.l.b16 %v324
      %v424 = vunpack.c.l.b16 %v325
      %v425 = vunpack.c.h.b16 %v325
      %v426 = vunpack.c.l.b16 %v326
      %v427 = vpack.c.b16 %v382, %v379
      %v428 = vpack.c.b16 %v383, %v380
      %v429 = vpack.c.b16 %v384, %v381
      %v430 = vpack.c.b16 %v388, %v385
      %v431 = vpack.c.b16 %v389, %v386
      %v432 = vpack.c.b16 %v390, %v387
      %v433 = vpack.c.b16 %v394, %v391
      %v434 = vpack.c.b16 %v395, %v392
      %v435 = vpack.c.b16 %v396, %v393
      %v436 = vpack.c.b16 %v400, %v397
      %v437 = vpack.c.b16 %v401, %v398
      %v438 = vpack.c.b16 %v402, %v399
      %v439 = vpack.c.b16 %v406, %v403
      %v440 = vpack.c.b16 %v407, %v404
      %v441 = vpack.c.b16 %v408, %v405
      %v442 = vpack.c.b16 %v412, %v409
      %v443 = vpack.c.b16 %v413, %v410
      %v444 = vpack.c.b16 %v414, %v411
      %v445 = vpack.c.b16 %v418, %v415
      %v446 = vpack.c.b16 %v419, %v416
      %v447 = vpack.c.b16 %v420, %v417
      %v448 = vpack.c.b16 %v424, %v421
      %v449 = vpack.c.b16 %v425, %v422
      %v450 = vpack.c.b16 %v426, %v423
      %475 = vmatprep.subr.bf16.mxu0 %v449
      %476 = vmatpush1.bf16.msra.mxu0 %v448
      %477 = vmatprep.subr.bf16.mxu0 %v446
      %478 = vmatpush1.bf16.msra.mxu0 %v445
      %479 = vmatprep.subr.bf16.mxu0 %v443
      %480 = vmatpush1.bf16.msra.mxu0 %v442
      %481 = vmatprep.subr.bf16.mxu0 %v440
      %482 = vmatpush1.bf16.msra.mxu0 %v439
      %483 = vmatprep.subr.bf16.mxu0 %v437
      %484 = vmatpush1.bf16.msra.mxu0 %v436
      %485 = vmatprep.subr.bf16.mxu0 %v434
      %486 = vmatpush1.bf16.msra.mxu0 %v433
      %487 = vmatprep.subr.bf16.mxu0 %v431
      %488 = vmatpush1.bf16.msra.mxu0 %v430
      %489 = vmatprep.subr.bf16.mxu0 %v428
      %490 = vmatpush1.bf16.msra.mxu0 %v427
      %491 = vmatprep.subr.bf16.mxu0 0
      %492 = vmatpush2.bf16.msra.mxu0 0
      %493 = vmatprep.subr.bf16.mxu0 0
      %494 = vmatpush2.bf16.msra.mxu0 0
      %495 = vmatprep.subr.bf16.mxu0 0
      %496 = vmatpush2.bf16.msra.mxu0 0
      %497 = vmatprep.subr.bf16.mxu0 0
      %498 = vmatpush2.bf16.msra.mxu0 0
      %499 = vmatprep.subr.bf16.mxu0 0
      %500 = vmatpush2.bf16.msra.mxu0 0
      %501 = vmatprep.subr.bf16.mxu0 0
      %502 = vmatpush2.bf16.msra.mxu0 0
      %503 = vmatprep.subr.bf16.mxu0 0
      %504 = vmatpush2.bf16.msra.mxu0 0
      %505 = vmatprep.subr.bf16.mxu0 0
      %506 = vmatpush2.bf16.msra.mxu0 0
      %507 = vmatprep.mubr.bf16.mxu0 0
      %508 = vmatmul.mubr.bf16.gmra.mxu0 %v330
      %v509 = vpop.f32.mrf.mxu0
      %v510 = vadd.f32 %v335, %v509
      %v511 = vpop.f32.mrf.mxu0
      %v512 = vadd.f32 %v339, %v511
      %v513 = vpop.f32.mrf.mxu0
      %v514 = vpop.f32.mrf.mxu0
      %515 = vdwg.mxu0
      %516 = vmatprep.subr.bf16.mxu0 0
      %517 = vmatpush1.bf16.msra.mxu0 %v450
      %518 = vmatprep.subr.bf16.mxu0 0
      %519 = vmatpush1.bf16.msra.mxu0 %v447
      %520 = vmatprep.subr.bf16.mxu0 0
      %521 = vmatpush1.bf16.msra.mxu0 %v444
      %522 = vmatprep.subr.bf16.mxu0 0
      %523 = vmatpush1.bf16.msra.mxu0 %v441
      %524 = vmatprep.subr.bf16.mxu0 0
      %525 = vmatpush1.bf16.msra.mxu0 %v438
      %526 = vmatprep.subr.bf16.mxu0 0
      %527 = vmatpush1.bf16.msra.mxu0 %v435
      %528 = vmatprep.subr.bf16.mxu0 0
      %529 = vmatpush1.bf16.msra.mxu0 %v432
      %530 = vmatprep.subr.bf16.mxu0 0
      %531 = vmatpush1.bf16.msra.mxu0 %v429
      %532 = vmatprep.subr.bf16.mxu0 0
      %533 = vmatpush2.bf16.msra.mxu0 0
      %534 = vmatprep.subr.bf16.mxu0 0
      %535 = vmatpush2.bf16.msra.mxu0 0
      %536 = vmatprep.subr.bf16.mxu0 0
      %537 = vmatpush2.bf16.msra.mxu0 0
      %538 = vmatprep.subr.bf16.mxu0 0
      %539 = vmatpush2.bf16.msra.mxu0 0
      %540 = vmatprep.subr.bf16.mxu0 0
      %541 = vmatpush2.bf16.msra.mxu0 0
      %542 = vmatprep.subr.bf16.mxu0 0
      %543 = vmatpush2.bf16.msra.mxu0 0
      %544 = vmatprep.subr.bf16.mxu0 0
      %545 = vmatpush2.bf16.msra.mxu0 0
      %546 = vmatprep.subr.bf16.mxu0 0
      %547 = vmatpush2.bf16.msra.mxu0 0
      %548 = vmatprep.mubr.bf16.mxu0 0
      %549 = vmatmul.mubr.bf16.gmra.mxu0 %v330
      %v550 = vpop.f32.mrf.mxu0
      %v551 = vadd.f32 %v343, %v550
      %v552 = vpop.f32.mrf.mxu0
      %v553 = vpop.f32.mrf.mxu0
      %v554 = vpop.f32.mrf.mxu0
      %555 = vdwg.mxu0
      %v556 = vunpack.c.l.bf16 %v329
      %v557 = vadd.f32 %v556, %v510
      %v558 = vxor.u32 %v557, 2147483648
      %v559 = vmul.f32 %v558, 1.442695
      %v560 = vpow.pop %v559
      %v561 = vadd.f32 %v560, 1.0
      %v562 = vrcp.pop %v561
      %v563 = vmul.f32 1.0, %v562
      %v565 = vrot.slane %v329, 1
      %v567 = vunpack.c.l.bf16 %v565
      %v568 = vadd.f32 %v567, %v512
      %v569 = vxor.u32 %v568, 2147483648
      %v570 = vmul.f32 %v569, 1.442695
      %v571 = vpow.pop %v570
      %v572 = vadd.f32 %v571, 1.0
      %v573 = vrcp.pop %v572
      %v574 = vmul.f32 1.0, %v573
      %v575 = vmul.f32 %v563, %v551
      %v576 = vrot.slane %v329, 2
      %v578 = vunpack.c.l.bf16 %v576
      %v579 = vadd.f32 %v578, %v575
      %v580 = vtanh.pop %v579
      %v581 = vsub.f32 %v328, %v580
      %v582 = vmul.f32 %v574, %v581
      %v583 = vadd.f32 %v580, %v582
      %v584 = vpack.c.bf16 %v583, %v583
      %585 = vst [vmem:[%s282] sm:$0x1] %v584
      %s586 = scalar_lea.vmem %s270, 3
      %v587 = vld [vmem:[%s586] sm:$0x7]
      %588 = vmatprep.subr.bf16.mxu0 %v449
      %589 = vmatpush1.bf16.msra.mxu0 %v448
      %590 = vmatprep.subr.bf16.mxu0 %v446
      %591 = vmatpush1.bf16.msra.mxu0 %v445
      %592 = vmatprep.subr.bf16.mxu0 %v443
      %593 = vmatpush1.bf16.msra.mxu0 %v442
      %594 = vmatprep.subr.bf16.mxu0 %v440
      %595 = vmatpush1.bf16.msra.mxu0 %v439
      %596 = vmatprep.subr.bf16.mxu0 %v437
      %597 = vmatpush1.bf16.msra.mxu0 %v436
      %598 = vmatprep.subr.bf16.mxu0 %v434
      %599 = vmatpush1.bf16.msra.mxu0 %v433
      %600 = vmatprep.subr.bf16.mxu0 %v431
      %601 = vmatpush1.bf16.msra.mxu0 %v430
      %602 = vmatprep.subr.bf16.mxu0 %v428
      %603 = vmatpush1.bf16.msra.mxu0 %v427
      %604 = vmatprep.subr.bf16.mxu0 0
      %605 = vmatpush2.bf16.msra.mxu0 0
      %606 = vmatprep.subr.bf16.mxu0 0
      %607 = vmatpush2.bf16.msra.mxu0 0
      %608 = vmatprep.subr.bf16.mxu0 0
      %609 = vmatpush2.bf16.msra.mxu0 0
      %610 = vmatprep.subr.bf16.mxu0 0
      %611 = vmatpush2.bf16.msra.mxu0 0
      %612 = vmatprep.subr.bf16.mxu0 0
      %613 = vmatpush2.bf16.msra.mxu0 0
      %614 = vmatprep.subr.bf16.mxu0 0
      %615 = vmatpush2.bf16.msra.mxu0 0
      %616 = vmatprep.subr.bf16.mxu0 0
      %617 = vmatpush2.bf16.msra.mxu0 0
      %618 = vmatprep.subr.bf16.mxu0 0
      %619 = vmatpush2.bf16.msra.mxu0 0
      %620 = vmatprep.mubr.bf16.mxu0 0
      %621 = vmatmul.mubr.bf16.gmra.mxu0 %v584
      %v622 = vpop.f32.mrf.mxu0
      %v623 = vadd.f32 %v335, %v622
      %v624 = vpop.f32.mrf.mxu0
      %v625 = vadd.f32 %v339, %v624
      %v626 = vpop.f32.mrf.mxu0
      %v627 = vpop.f32.mrf.mxu0
      %628 = vdwg.mxu0
      %629 = vmatprep.subr.bf16.mxu0 0
      %630 = vmatpush1.bf16.msra.mxu0 %v450
      %631 = vmatprep.subr.bf16.mxu0 0
      %632 = vmatpush1.bf16.msra.mxu0 %v447
      %633 = vmatprep.subr.bf16.mxu0 0
      %634 = vmatpush1.bf16.msra.mxu0 %v444
      %635 = vmatprep.subr.bf16.mxu0 0
      %636 = vmatpush1.bf16.msra.mxu0 %v441
      %637 = vmatprep.subr.bf16.mxu0 0
      %638 = vmatpush1.bf16.msra.mxu0 %v438
      %639 = vmatprep.subr.bf16.mxu0 0
      %640 = vmatpush1.bf16.msra.mxu0 %v435
      %641 = vmatprep.subr.bf16.mxu0 0
      %642 = vmatpush1.bf16.msra.mxu0 %v432
      %643 = vmatprep.subr.bf16.mxu0 0
      %644 = vmatpush1.bf16.msra.mxu0 %v429
      %645 = vmatprep.subr.bf16.mxu0 0
      %646 = vmatpush2.bf16.msra.mxu0 0
      %647 = vmatprep.subr.bf16.mxu0 0
      %648 = vmatpush2.bf16.msra.mxu0 0
      %649 = vmatprep.subr.bf16.mxu0 0
      %650 = vmatpush2.bf16.msra.mxu0 0
      %651 = vmatprep.subr.bf16.mxu0 0
      %652 = vmatpush2.bf16.msra.mxu0 0
      %653 = vmatprep.subr.bf16.mxu0 0
      %654 = vmatpush2.bf16.msra.mxu0 0
      %655 = vmatprep.subr.bf16.mxu0 0
      %656 = vmatpush2.bf16.msra.mxu0 0
      %657 = vmatprep.subr.bf16.mxu0 0
      %658 = vmatpush2.bf16.msra.mxu0 0
      %659 = vmatprep.subr.bf16.mxu0 0
      %660 = vmatpush2.bf16.msra.mxu0 0
      %661 = vmatprep.mubr.bf16.mxu0 0
      %662 = vmatmul.mubr.bf16.gmra.mxu0 %v584
      %v663 = vpop.f32.mrf.mxu0
      %v664 = vadd.f32 %v343, %v663
      %v665 = vpop.f32.mrf.mxu0
      %v666 = vpop.f32.mrf.mxu0
      %v667 = vpop.f32.mrf.mxu0
      %668 = vdwg.mxu0
      %v669 = vunpack.c.l.bf16 %v587
      %v670 = vadd.f32 %v669, %v623
      %v671 = vxor.u32 %v670, 2147483648
      %v672 = vmul.f32 %v671, 1.442695
      %v673 = vpow.pop %v672
      %v674 = vadd.f32 %v673, 1.0
      %v675 = vrcp.pop %v674
      %v676 = vmul.f32 1.0, %v675
      %v678 = vrot.slane %v587, 1
      %v680 = vunpack.c.l.bf16 %v678
      %v681 = vadd.f32 %v680, %v625
      %v682 = vxor.u32 %v681, 2147483648
      %v683 = vmul.f32 %v682, 1.442695
      %v684 = vpow.pop %v683
      %v685 = vadd.f32 %v684, 1.0
      %v686 = vrcp.pop %v685
      %v687 = vmul.f32 1.0, %v686
      %v688 = vmul.f32 %v676, %v664
      %v689 = vrot.slane %v587, 2
      %v691 = vunpack.c.l.bf16 %v689
      %v692 = vadd.f32 %v691, %v688
      %v693 = vtanh.pop %v692
      %v694 = vsub.f32 %v583, %v693
      %v695 = vmul.f32 %v687, %v694
      %v696 = vadd.f32 %v693, %v695
      %v697 = vpack.c.bf16 %v696, %v696
      %s698 = scalar_lea.vmem %s282, 1
      %699 = vst [vmem:[%s698] sm:$0x1] %v697
      %s700 = scalar_lea.vmem %s270, 6
      %v701 = vld [vmem:[%s700] sm:$0x7]
      %702 = vmatprep.subr.bf16.mxu0 %v449
      %703 = vmatpush1.bf16.msra.mxu0 %v448
      %704 = vmatprep.subr.bf16.mxu0 %v446
      %705 = vmatpush1.bf16.msra.mxu0 %v445
      %706 = vmatprep.subr.bf16.mxu0 %v443
      %707 = vmatpush1.bf16.msra.mxu0 %v442
      %708 = vmatprep.subr.bf16.mxu0 %v440
      %709 = vmatpush1.bf16.msra.mxu0 %v439
      %710 = vmatprep.subr.bf16.mxu0 %v437
      %711 = vmatpush1.bf16.msra.mxu0 %v436
      %712 = vmatprep.subr.bf16.mxu0 %v434
      %713 = vmatpush1.bf16.msra.mxu0 %v433
      %714 = vmatprep.subr.bf16.mxu0 %v431
      %715 = vmatpush1.bf16.msra.mxu0 %v430
      %716 = vmatprep.subr.bf16.mxu0 %v428
      %717 = vmatpush1.bf16.msra.mxu0 %v427
      %718 = vmatprep.subr.bf16.mxu0 0
      %719 = vmatpush2.bf16.msra.mxu0 0
      %720 = vmatprep.subr.bf16.mxu0 0
      %721 = vmatpush2.bf16.msra.mxu0 0
      %722 = vmatprep.subr.bf16.mxu0 0
      %723 = vmatpush2.bf16.msra.mxu0 0
      %724 = vmatprep.subr.bf16.mxu0 0
      %725 = vmatpush2.bf16.msra.mxu0 0
      %726 = vmatprep.subr.bf16.mxu0 0
      %727 = vmatpush2.bf16.msra.mxu0 0
      %728 = vmatprep.subr.bf16.mxu0 0
      %729 = vmatpush2.bf16.msra.mxu0 0
      %730 = vmatprep.subr.bf16.mxu0 0
      %731 = vmatpush2.bf16.msra.mxu0 0
      %732 = vmatprep.subr.bf16.mxu0 0
      %733 = vmatpush2.bf16.msra.mxu0 0
      %734 = vmatprep.mubr.bf16.mxu0 0
      %735 = vmatmul.mubr.bf16.gmra.mxu0 %v697
      %v736 = vpop.f32.mrf.mxu0
      %v737 = vadd.f32 %v335, %v736
      %v738 = vpop.f32.mrf.mxu0
      %v739 = vadd.f32 %v339, %v738
      %v740 = vpop.f32.mrf.mxu0
      %v741 = vpop.f32.mrf.mxu0
      %742 = vdwg.mxu0
      %743 = vmatprep.subr.bf16.mxu0 0
      %744 = vmatpush1.bf16.msra.mxu0 %v450
      %745 = vmatprep.subr.bf16.mxu0 0
      %746 = vmatpush1.bf16.msra.mxu0 %v447
      %747 = vmatprep.subr.bf16.mxu0 0
      %748 = vmatpush1.bf16.msra.mxu0 %v444
      %749 = vmatprep.subr.bf16.mxu0 0
      %750 = vmatpush1.bf16.msra.mxu0 %v441
      %751 = vmatprep.subr.bf16.mxu0 0
      %752 = vmatpush1.bf16.msra.mxu0 %v438
      %753 = vmatprep.subr.bf16.mxu0 0
      %754 = vmatpush1.bf16.msra.mxu0 %v435
      %755 = vmatprep.subr.bf16.mxu0 0
      %756 = vmatpush1.bf16.msra.mxu0 %v432
      %757 = vmatprep.subr.bf16.mxu0 0
      %758 = vmatpush1.bf16.msra.mxu0 %v429
      %759 = vmatprep.subr.bf16.mxu0 0
      %760 = vmatpush2.bf16.msra.mxu0 0
      %761 = vmatprep.subr.bf16.mxu0 0
      %762 = vmatpush2.bf16.msra.mxu0 0
      %763 = vmatprep.subr.bf16.mxu0 0
      %764 = vmatpush2.bf16.msra.mxu0 0
      %765 = vmatprep.subr.bf16.mxu0 0
      %766 = vmatpush2.bf16.msra.mxu0 0
      %767 = vmatprep.subr.bf16.mxu0 0
      %768 = vmatpush2.bf16.msra.mxu0 0
      %769 = vmatprep.subr.bf16.mxu0 0
      %770 = vmatpush2.bf16.msra.mxu0 0
      %771 = vmatprep.subr.bf16.mxu0 0
      %772 = vmatpush2.bf16.msra.mxu0 0
      %773 = vmatprep.subr.bf16.mxu0 0
      %774 = vmatpush2.bf16.msra.mxu0 0
      %775 = vmatprep.mubr.bf16.mxu0 0
      %776 = vmatmul.mubr.bf16.gmra.mxu0 %v697
      %v777 = vpop.f32.mrf.mxu0
      %v778 = vadd.f32 %v343, %v777
      %v779 = vpop.f32.mrf.mxu0
      %v780 = vpop.f32.mrf.mxu0
      %v781 = vpop.f32.mrf.mxu0
      %782 = vdwg.mxu0
      %v783 = vunpack.c.l.bf16 %v701
      %v784 = vadd.f32 %v783, %v737
      %v785 = vxor.u32 %v784, 2147483648
      %v786 = vmul.f32 %v785, 1.442695
      %v787 = vpow.pop %v786
      %v788 = vadd.f32 %v787, 1.0
      %v789 = vrcp.pop %v788
      %v790 = vmul.f32 1.0, %v789
      %v792 = vrot.slane %v701, 1
      %v794 = vunpack.c.l.bf16 %v792
      %v795 = vadd.f32 %v794, %v739
      %v796 = vxor.u32 %v795, 2147483648
      %v797 = vmul.f32 %v796, 1.442695
      %v798 = vpow.pop %v797
      %v799 = vadd.f32 %v798, 1.0
      %v800 = vrcp.pop %v799
      %v801 = vmul.f32 1.0, %v800
      %v802 = vmul.f32 %v790, %v778
      %v803 = vrot.slane %v701, 2
      %v805 = vunpack.c.l.bf16 %v803
      %v806 = vadd.f32 %v805, %v802
      %v807 = vtanh.pop %v806
      %v808 = vsub.f32 %v696, %v807
      %v809 = vmul.f32 %v801, %v808
      %v810 = vadd.f32 %v807, %v809
      %v811 = vpack.c.bf16 %v810, %v810
      %s812 = scalar_lea.vmem %s282, 2
      %813 = vst [vmem:[%s812] sm:$0x1] %v811
      %s814 = scalar_lea.vmem %s270, 9
      %v815 = vld [vmem:[%s814] sm:$0x7]
      %816 = vmatprep.subr.bf16.mxu0 %v449
      %817 = vmatpush1.bf16.msra.mxu0 %v448
      %818 = vmatprep.subr.bf16.mxu0 %v446
      %819 = vmatpush1.bf16.msra.mxu0 %v445
      %820 = vmatprep.subr.bf16.mxu0 %v443
      %821 = vmatpush1.bf16.msra.mxu0 %v442
      %822 = vmatprep.subr.bf16.mxu0 %v440
      %823 = vmatpush1.bf16.msra.mxu0 %v439
      %824 = vmatprep.subr.bf16.mxu0 %v437
      %825 = vmatpush1.bf16.msra.mxu0 %v436
      %826 = vmatprep.subr.bf16.mxu0 %v434
      %827 = vmatpush1.bf16.msra.mxu0 %v433
      %828 = vmatprep.subr.bf16.mxu0 %v431
      %829 = vmatpush1.bf16.msra.mxu0 %v430
      %830 = vmatprep.subr.bf16.mxu0 %v428
      %831 = vmatpush1.bf16.msra.mxu0 %v427
      %832 = vmatprep.subr.bf16.mxu0 0
      %833 = vmatpush2.bf16.msra.mxu0 0
      %834 = vmatprep.subr.bf16.mxu0 0
      %835 = vmatpush2.bf16.msra.mxu0 0
      %836 = vmatprep.subr.bf16.mxu0 0
      %837 = vmatpush2.bf16.msra.mxu0 0
      %838 = vmatprep.subr.bf16.mxu0 0
      %839 = vmatpush2.bf16.msra.mxu0 0
      %840 = vmatprep.subr.bf16.mxu0 0
      %841 = vmatpush2.bf16.msra.mxu0 0
      %842 = vmatprep.subr.bf16.mxu0 0
      %843 = vmatpush2.bf16.msra.mxu0 0
      %844 = vmatprep.subr.bf16.mxu0 0
      %845 = vmatpush2.bf16.msra.mxu0 0
      %846 = vmatprep.subr.bf16.mxu0 0
      %847 = vmatpush2.bf16.msra.mxu0 0
      %848 = vmatprep.mubr.bf16.mxu0 0
      %849 = vmatmul.mubr.bf16.gmra.mxu0 %v811
      %v850 = vpop.f32.mrf.mxu0
      %v851 = vadd.f32 %v335, %v850
      %v852 = vpop.f32.mrf.mxu0
      %v853 = vadd.f32 %v339, %v852
      %v854 = vpop.f32.mrf.mxu0
      %v855 = vpop.f32.mrf.mxu0
      %856 = vdwg.mxu0
      %857 = vmatprep.subr.bf16.mxu0 0
      %858 = vmatpush1.bf16.msra.mxu0 %v450
      %859 = vmatprep.subr.bf16.mxu0 0
      %860 = vmatpush1.bf16.msra.mxu0 %v447
      %861 = vmatprep.subr.bf16.mxu0 0
      %862 = vmatpush1.bf16.msra.mxu0 %v444
      %863 = vmatprep.subr.bf16.mxu0 0
      %864 = vmatpush1.bf16.msra.mxu0 %v441
      %865 = vmatprep.subr.bf16.mxu0 0
      %866 = vmatpush1.bf16.msra.mxu0 %v438
      %867 = vmatprep.subr.bf16.mxu0 0
      %868 = vmatpush1.bf16.msra.mxu0 %v435
      %869 = vmatprep.subr.bf16.mxu0 0
      %870 = vmatpush1.bf16.msra.mxu0 %v432
      %871 = vmatprep.subr.bf16.mxu0 0
      %872 = vmatpush1.bf16.msra.mxu0 %v429
      %873 = vmatprep.subr.bf16.mxu0 0
      %874 = vmatpush2.bf16.msra.mxu0 0
      %875 = vmatprep.subr.bf16.mxu0 0
      %876 = vmatpush2.bf16.msra.mxu0 0
      %877 = vmatprep.subr.bf16.mxu0 0
      %878 = vmatpush2.bf16.msra.mxu0 0
      %879 = vmatprep.subr.bf16.mxu0 0
      %880 = vmatpush2.bf16.msra.mxu0 0
      %881 = vmatprep.subr.bf16.mxu0 0
      %882 = vmatpush2.bf16.msra.mxu0 0
      %883 = vmatprep.subr.bf16.mxu0 0
      %884 = vmatpush2.bf16.msra.mxu0 0
      %885 = vmatprep.subr.bf16.mxu0 0
      %886 = vmatpush2.bf16.msra.mxu0 0
      %887 = vmatprep.subr.bf16.mxu0 0
      %888 = vmatpush2.bf16.msra.mxu0 0
      %889 = vmatprep.mubr.bf16.mxu0 0
      %890 = vmatmul.mubr.bf16.gmra.mxu0 %v811
      %v891 = vpop.f32.mrf.mxu0
      %v892 = vadd.f32 %v343, %v891
      %v893 = vpop.f32.mrf.mxu0
      %v894 = vpop.f32.mrf.mxu0
      %v895 = vpop.f32.mrf.mxu0
      %896 = vdwg.mxu0
      %v897 = vunpack.c.l.bf16 %v815
      %v898 = vadd.f32 %v897, %v851
      %v899 = vxor.u32 %v898, 2147483648
      %v900 = vmul.f32 %v899, 1.442695
      %v901 = vpow.pop %v900
      %v902 = vadd.f32 %v901, 1.0
      %v903 = vrcp.pop %v902
      %v904 = vmul.f32 1.0, %v903
      %v906 = vrot.slane %v815, 1
      %v908 = vunpack.c.l.bf16 %v906
      %v909 = vadd.f32 %v908, %v853
      %v910 = vxor.u32 %v909, 2147483648
      %v911 = vmul.f32 %v910, 1.442695
      %v912 = vpow.pop %v911
      %v913 = vadd.f32 %v912, 1.0
      %v914 = vrcp.pop %v913
      %v915 = vmul.f32 1.0, %v914
      %v916 = vmul.f32 %v904, %v892
      %v917 = vrot.slane %v815, 2
      %v919 = vunpack.c.l.bf16 %v917
      %v920 = vadd.f32 %v919, %v916
      %v921 = vtanh.pop %v920
      %v922 = vsub.f32 %v810, %v921
      %v923 = vmul.f32 %v915, %v922
      %v924 = vadd.f32 %v921, %v923
      %v925 = vpack.c.bf16 %v924, %v924
      %s926 = scalar_lea.vmem %s282, 3
      %927 = vst [vmem:[%s926] sm:$0x1] %v925
      %928 = vst [vmem:[#allocation2] sm:$0x3] %v924
      %p929 = scmp.eq.s32.totalorder %s22, 1
      // Predicated region
      $region41: #{attention_decoder_forward.2} parent=35 // pred_check
        %p930 = pneg %p929
      $region42: #{attention_decoder_forward.2} parent=35 // pred_check_branch
        %932 = sbr.rel (%p930) target = $region44
      $region43: #{attention_decoder_forward.2} parent=35 // pred_region
        %933 = vst [vmem:[%s287] sm:$0x3] %v924
      $region44: #{attention_decoder_forward.2} parent=35 // pred_fallthru
        _
      %s934 = smul.u32 4, %s22
      %p935 = scmp.lt.s32.totalorder %s934, 7
      %s936 = scalar_select %p935, %s934, 7
      %p937 = scmp.lt.s32.totalorder %s21, 0
      %s938 = scalar_select %p937, %s21, 0
      %s939 = sadd.s32 %s938, %s936
      %s940 = scalar_lea.vmem %s4, %s939
      %p941 = scmp.lt.s32.totalorder %s21, 0
      %s942 = scalar_select %p941, %s21, 0
      %s943 = smul.addr %s942, 2
      %s944 = scalar_lea.vmem %s5, %s943
      // Predicated region
      $region45: #{attention_decoder_forward.2} parent=35 // pred_check
        %p945 = pneg %p145
      $region46: #{attention_decoder_forward.2} parent=35 // pred_check_branch
        %947 = sbr.rel (%p945) target = $region48
      $region47: #{attention_decoder_forward.2} parent=35 // pred_region
        %s948 = smul.u32 4, %s22
      $region48: #{attention_decoder_forward.2} parent=35 // pred_fallthru
        _
      // Predicated region
      $region49: #{attention_decoder_forward.2} parent=35 // pred_check
        %p949 = pneg %p171
      $region50: #{attention_decoder_forward.2} parent=35 // pred_check_branch
        %951 = sbr.rel (%p949) target = $region52
      $region51: #{attention_decoder_forward.2} parent=35 // pred_region
        _
      $region52: #{attention_decoder_forward.2} parent=35 // pred_fallthru
        _
      // Predicated region
      $region53: #{attention_decoder_forward.2} parent=35 // pred_check
        %p952 = pneg %p171
      $region54: #{attention_decoder_forward.2} parent=35 // pred_check_branch
        %954 = sbr.rel (%p952) target = $region56
      $region55: #{attention_decoder_forward.2} parent=35 // pred_region
        %p955 = scmp.lt.s32.totalorder %s21, 0
        %s956 = scalar_select %p955, %s21, 0
        %s957 = smul.addr %s956, 2
        %s958 = scalar_lea.vmem %s5, %s957
      $region56: #{attention_decoder_forward.2} parent=35 // pred_fallthru
        _
    $region36: #{attention_decoder_forward.2} parent=5 // pred_fallthru
      _
    %p959 = scmp.le.s32.totalorder 2, %s12
    // Predicated region
    $region57: #{attention_decoder_forward.2} parent=5 // pred_check
      %p960 = pneg %p959
    $region58: #{attention_decoder_forward.2} parent=5 // pred_check_branch
      %962 = sbr.rel (%p960) target = $region60
    $region59: #{attention_decoder_forward.2} parent=5 // pred_region
      %s963 = ssub.s32 %s12, 2
      // Predicated region
      $region61: #{attention_decoder_forward.2} parent=59 // pred_check
        %p964 = pneg %p151
      $region62: #{attention_decoder_forward.2} parent=59 // pred_check_branch
        %966 = sbr.rel (%p964) target = $region64
      $region63: #{attention_decoder_forward.2} parent=59 // pred_region
        %s967 = smul.u32 4, %s24
        %p968 = scmp.lt.s32.totalorder %s967, 7
        %s969 = scalar_select %p968, %s967, 7
        %p970 = scmp.lt.s32.totalorder %s23, 0
        %s971 = scalar_select %p970, %s23, 0
        %s972 = sadd.s32 %s971, %s969
        %s973 = scalar_lea.vmem %s4, %s972
      $region64: #{attention_decoder_forward.2} parent=59 // pred_fallthru
        _
    $region60: #{attention_decoder_forward.2} parent=5 // pred_fallthru
      _
  $region6: #{attention_decoder_forward.2} parent=0 // loop_footer
    %s16 = sadd.s32 1, %s12
  $region7: #{attention_decoder_forward.2} parent=0 // loop_footer_branch
    %11 = sbr.rel target = $region3
  $region8: #{attention_decoder_forward.2} parent=0 // loop_exit
    _

// kernel: attention_decoder_forward.3
$region0: #{attention_decoder_forward.3}
  #allocation0 [shape = 'u32[]', space=smem, size = 0x4, offset = 0x4, fixed_abs, tag = 'smem constant byte address 0x4 - core index']
  #allocation1 [shape = 'u32[144,128]{1,0:T(1,128)}', space=vmem, size = 0x12000, scoped, tag = 'internal scratch']
  #allocation2 [shape = 'bf16[2,16,128]{2,1,0:T(8,128)(2,1)}', space=vmem, size = 0x2000, scoped, tag = 'scratch operand']
  %s0 = inlined_call_operand.vmem [shape: bf16[2,10,128], index: 0, kind: input, shape index: {}]
  %s1 = inlined_call_operand.vmem [shape: bf16[2,16,128], index: 1, kind: input, shape index: {}]
  %s2 = inlined_call_operand.vmem [shape: bf16[256,128], index: 2, kind: input, shape index: {}]
  %s3 = inlined_call_operand.vmem [shape: f32[1,128], index: 3, kind: input, shape index: {}]
  %s4 = inlined_call_operand.vmem [shape: f32[32,128], index: 4, kind: output, shape index: {0}]
  %s5 = inlined_call_operand.vmem [shape: f32[2,16,10], index: 5, kind: output, shape index: {1}]
  %6 = xla_tuple %s4, %s5
  %s7 = sld [smem:[#allocation0]]
  $region38: #{attention_decoder_forward.3} parent=0
    _
  %s9 = ssub.s32 1, %s7
  %s10 = scalar_select 0, %s9, %s7
  // Predicated region
  $region2: #{attention_decoder_forward.3} parent=0 // pred_check
    _
  $region3: #{attention_decoder_forward.3} parent=0 // pred_check_branch
    %12 = sbr.rel (0) target = $region5
  $region4: #{attention_decoder_forward.3} parent=0 // pred_region
    _
  $region5: #{attention_decoder_forward.3} parent=0 // pred_fallthru
    _
  // Predicated region
  $region6: #{attention_decoder_forward.3} parent=0 // pred_check
    _
  $region7: #{attention_decoder_forward.3} parent=0 // pred_check_branch
    %14 = sbr.rel (0) target = $region9
  $region8: #{attention_decoder_forward.3} parent=0 // pred_region
    _
  $region9: #{attention_decoder_forward.3} parent=0 // pred_fallthru
    _
  // Predicated region
  $region10: #{attention_decoder_forward.3} parent=0 // pred_check
    _
  $region11: #{attention_decoder_forward.3} parent=0 // pred_check_branch
    %16 = sbr.rel (0) target = $region13
  $region12: #{attention_decoder_forward.3} parent=0 // pred_region
    _
  $region13: #{attention_decoder_forward.3} parent=0 // pred_fallthru
    _
  // Predicated region
  $region14: #{attention_decoder_forward.3} parent=0 // pred_check
    _
  $region15: #{attention_decoder_forward.3} parent=0 // pred_check_branch
    %18 = sbr.rel (0) target = $region17
  $region16: #{attention_decoder_forward.3} parent=0 // pred_region
    _
  $region17: #{attention_decoder_forward.3} parent=0 // pred_fallthru
    _
  %p20 = scmp.eq.s32.totalorder 0, 0
  // Predicated region
  $region18: #{attention_decoder_forward.3} parent=0 // pred_check
    %p21 = pneg %p20
  $region19: #{attention_decoder_forward.3} parent=0 // pred_check_branch
    %23 = sbr.rel (%p21) target = $region21
  $region20: #{attention_decoder_forward.3} parent=0 // pred_region
    %v24 = vld [vmem:[%s0] sm:$0xf]
    %v25 = vld [vmem:[%s0 + $0x4] sm:$0x1]
    %v26 = vld [vmem:[%s0 + $0x8] sm:$0xf]
    %v27 = vld [vmem:[%s0 + $0xc] sm:$0x1]
    %v28 = vld [vmem:[%s1] sm:$0xf]
    %v29 = vld [vmem:[%s1 + $0x4] sm:$0xf]
    %v30 = vld [vmem:[%s1 + $0x8] sm:$0xf]
    %v31 = vld [vmem:[%s1 + $0xc] sm:$0xf]
    %v34 = vunpack.c.l.b16 %v28
    %v35 = vunpack.c.l.b16 %v29
    %v36 = vpack.c.b16 %v35, %v34
    %v40 = vunpack.c.l.b16 %v24
    %v41 = vunpack.c.l.b16 %v25
    %v42 = vpack.c.b16 %v41, %v40
    %44 = vmatprep.subr.bf16.mxu0 0
    %45 = vmatpush1.bf16.xpose.msra.mxu0 0
    %46 = vmatprep.subr.bf16.mxu0 0
    %47 = vmatpush1.bf16.xpose.msra.mxu0 0
    %48 = vmatprep.subr.bf16.mxu0 0
    %49 = vmatpush1.bf16.xpose.msra.mxu0 0
    %50 = vmatprep.subr.bf16.mxu0 0
    %51 = vmatpush1.bf16.xpose.msra.mxu0 0
    %52 = vmatprep.subr.bf16.mxu0 0
    %53 = vmatpush1.bf16.xpose.msra.mxu0 0
    %54 = vmatprep.subr.bf16.mxu0 0
    %55 = vmatpush1.bf16.xpose.msra.mxu0 0
    %56 = vmatprep.subr.bf16.mxu0 0
    %57 = vmatpush1.bf16.xpose.msra.mxu0 0
    %58 = vmatprep.subr.bf16.mxu0 0
    %59 = vmatpush1.bf16.xpose.msra.mxu0 %v42
    %60 = vmatprep.subr.bf16.mxu0 0
    %61 = vmatpush2.bf16.xpose.msra.mxu0 0
    %62 = vmatprep.subr.bf16.mxu0 0
    %63 = vmatpush2.bf16.xpose.msra.mxu0 0
    %64 = vmatprep.subr.bf16.mxu0 0
    %65 = vmatpush2.bf16.xpose.msra.mxu0 0
    %66 = vmatprep.subr.bf16.mxu0 0
    %67 = vmatpush2.bf16.xpose.msra.mxu0 0
    %68 = vmatprep.subr.bf16.mxu0 0
    %69 = vmatpush2.bf16.xpose.msra.mxu0 0
    %70 = vmatprep.subr.bf16.mxu0 0
    %71 = vmatpush2.bf16.xpose.msra.mxu0 0
    %72 = vmatprep.subr.bf16.mxu0 0
    %73 = vmatpush2.bf16.xpose.msra.mxu0 0
    %74 = vmatprep.subr.bf16.mxu0 0
    %75 = vmatpush2.bf16.xpose.msra.mxu0 0
    %76 = vmatprep.mubr.bf16.mxu0 0
    %77 = vmatmul.mubr.bf16.gmra.mxu0 %v36
    %v78 = vpop.f32.mrf.mxu0
    %v79 = vadd.f32 0.0, %v78
    %v80 = vpop.f32.mrf.mxu0
    %v81 = vpop.f32.mrf.mxu0
    %v82 = vadd.f32 0.0, %v81
    %v83 = vpop.f32.mrf.mxu0
    %84 = vdwg.mxu0
    %v87 = vunpack.c.l.b16 %v30
    %v88 = vunpack.c.l.b16 %v31
    %v89 = vpack.c.b16 %v88, %v87
    %v93 = vunpack.c.l.b16 %v26
    %v94 = vunpack.c.l.b16 %v27
    %v95 = vpack.c.b16 %v94, %v93
    %97 = vmatprep.subr.bf16.mxu0 0
    %98 = vmatpush1.bf16.xpose.msra.mxu0 0
    %99 = vmatprep.subr.bf16.mxu0 0
    %100 = vmatpush1.bf16.xpose.msra.mxu0 0
    %101 = vmatprep.subr.bf16.mxu0 0
    %102 = vmatpush1.bf16.xpose.msra.mxu0 0
    %103 = vmatprep.subr.bf16.mxu0 0
    %104 = vmatpush1.bf16.xpose.msra.mxu0 0
    %105 = vmatprep.subr.bf16.mxu0 0
    %106 = vmatpush1.bf16.xpose.msra.mxu0 0
    %107 = vmatprep.subr.bf16.mxu0 0
    %108 = vmatpush1.bf16.xpose.msra.mxu0 0
    %109 = vmatprep.subr.bf16.mxu0 0
    %110 = vmatpush1.bf16.xpose.msra.mxu0 0
    %111 = vmatprep.subr.bf16.mxu0 0
    %112 = vmatpush1.bf16.xpose.msra.mxu0 %v95
    %113 = vmatprep.subr.bf16.mxu0 0
    %114 = vmatpush2.bf16.xpose.msra.mxu0 0
    %115 = vmatprep.subr.bf16.mxu0 0
    %116 = vmatpush2.bf16.xpose.msra.mxu0 0
    %117 = vmatprep.subr.bf16.mxu0 0
    %118 = vmatpush2.bf16.xpose.msra.mxu0 0
    %119 = vmatprep.subr.bf16.mxu0 0
    %120 = vmatpush2.bf16.xpose.msra.mxu0 0
    %121 = vmatprep.subr.bf16.mxu0 0
    %122 = vmatpush2.bf16.xpose.msra.mxu0 0
    %123 = vmatprep.subr.bf16.mxu0 0
    %124 = vmatpush2.bf16.xpose.msra.mxu0 0
    %125 = vmatprep.subr.bf16.mxu0 0
    %126 = vmatpush2.bf16.xpose.msra.mxu0 0
    %127 = vmatprep.subr.bf16.mxu0 0
    %128 = vmatpush2.bf16.xpose.msra.mxu0 0
    %129 = vmatprep.mubr.bf16.mxu0 0
    %130 = vmatmul.mubr.bf16.gmra.mxu0 %v89
    %v131 = vpop.f32.mrf.mxu0
    %v132 = vadd.f32 0.0, %v131
    %v133 = vpop.f32.mrf.mxu0
    %v134 = vpop.f32.mrf.mxu0
    %v135 = vadd.f32 0.0, %v134
    %v136 = vpop.f32.mrf.mxu0
    %137 = vdwg.mxu0
    %vm138 = vcmask 80896
    %v139 = vsel %vm138, %v79, -inf
    %140 = vmax.xlane.f32.xlu0 %v139
    %v141 = vpop.xlane.xlu0 %140
    %v142 = vsel %vm138, %v82, -inf
    %143 = vmax.xlane.f32.xlu0 %v142
    %v144 = vpop.xlane.xlu0 %143
    %v145 = vsel %vm138, %v132, -inf
    %146 = vmax.xlane.f32.xlu0 %v145
    %v147 = vpop.xlane.xlu0 %146
    %v148 = vsel %vm138, %v135, -inf
    %149 = vmax.xlane.f32.xlu0 %v148
    %v150 = vpop.xlane.xlu0 %149
    %v151 = vsub.f32 %v79, %v141
    %v152 = vsub.f32 %v82, %v144
    %v153 = vsub.f32 %v132, %v147
    %v154 = vsub.f32 %v135, %v150
    %v155 = vmul.f32 %v151, 1.442695
    %v156 = vpow.pop %v155
    %v157 = vmul.f32 %v152, 1.442695
    %v158 = vpow.pop %v157
    %v159 = vmul.f32 %v153, 1.442695
    %v160 = vpow.pop %v159
    %v161 = vmul.f32 %v154, 1.442695
    %v162 = vpow.pop %v161
    %v163 = vsel %vm138, %v156, 0.0
    %164 = vadd.xlane.f32.xlu0 %v163
    %v165 = vpop.xlane.xlu0 %164
    %v166 = vsel %vm138, %v158, 0.0
    %167 = vadd.xlane.f32.xlu0 %v166
    %v168 = vpop.xlane.xlu0 %167
    %v169 = vsel %vm138, %v160, 0.0
    %170 = vadd.xlane.f32.xlu0 %v169
    %v171 = vpop.xlane.xlu0 %170
    %v172 = vsel %vm138, %v162, 0.0
    %173 = vadd.xlane.f32.xlu0 %v172
    %v174 = vpop.xlane.xlu0 %173
    %v175 = vrcp.pop %v165
    %v176 = vrcp.pop %v168
    %v177 = vrcp.pop %v171
    %v178 = vrcp.pop %v174
    %v179 = vmul.f32 %v156, %v175
    %v180 = vmul.f32 %v158, %v176
    %v181 = vmul.f32 %v160, %v177
    %v182 = vmul.f32 %v162, %v178
    %183 = vst.msk [vmem:[%s5] sm:$0xff] %vm138, %v179
    %184 = vst.msk [vmem:[%s5 + $0x8] sm:$0xff] %vm138, %v180
    %185 = vst.msk [vmem:[%s5 + $0x10] sm:$0xff] %vm138, %v181
    %186 = vst.msk [vmem:[%s5 + $0x18] sm:$0xff] %vm138, %v182
    %v187 = vpack.c.bf16 %v180, %v179
    %v188 = vpack.c.bf16 %v182, %v181
    %v190 = vsel %vm138, %v187, 0
    %vm192 = vcmask 1044480
    %v194 = vsel %vm192, %v42, 0
    %196 = vmatprep.subr.bf16.mxu0 0
    %197 = vmatpush1.bf16.msra.mxu0 0
    %198 = vmatprep.subr.bf16.mxu0 0
    %199 = vmatpush1.bf16.msra.mxu0 0
    %200 = vmatprep.subr.bf16.mxu0 0
    %201 = vmatpush1.bf16.msra.mxu0 0
    %202 = vmatprep.subr.bf16.mxu0 0
    %203 = vmatpush1.bf16.msra.mxu0 0
    %204 = vmatprep.subr.bf16.mxu0 0
    %205 = vmatpush1.bf16.msra.mxu0 0
    %206 = vmatprep.subr.bf16.mxu0 0
    %207 = vmatpush1.bf16.msra.mxu0 0
    %208 = vmatprep.subr.bf16.mxu0 0
    %209 = vmatpush1.bf16.msra.mxu0 0
    %210 = vmatprep.subr.bf16.mxu0 0
    %211 = vmatpush1.bf16.msra.mxu0 %v194
    %212 = vmatprep.subr.bf16.mxu0 0
    %213 = vmatpush2.bf16.msra.mxu0 0
    %214 = vmatprep.subr.bf16.mxu0 0
    %215 = vmatpush2.bf16.msra.mxu0 0
    %216 = vmatprep.subr.bf16.mxu0 0
    %217 = vmatpush2.bf16.msra.mxu0 0
    %218 = vmatprep.subr.bf16.mxu0 0
    %219 = vmatpush2.bf16.msra.mxu0 0
    %220 = vmatprep.subr.bf16.mxu0 0
    %221 = vmatpush2.bf16.msra.mxu0 0
    %222 = vmatprep.subr.bf16.mxu0 0
    %223 = vmatpush2.bf16.msra.mxu0 0
    %224 = vmatprep.subr.bf16.mxu0 0
    %225 = vmatpush2.bf16.msra.mxu0 0
    %226 = vmatprep.subr.bf16.mxu0 0
    %227 = vmatpush2.bf16.msra.mxu0 0
    %228 = vmatprep.mubr.bf16.mxu0 0
    %229 = vmatmul.mubr.bf16.gmra.mxu0 %v190
    %v230 = vpop.f32.mrf.mxu0
    %v231 = vadd.f32 0.0, %v230
    %v232 = vpop.f32.mrf.mxu0
    %v233 = vpop.f32.mrf.mxu0
    %v234 = vadd.f32 0.0, %v233
    %v235 = vpop.f32.mrf.mxu0
    %236 = vdwg.mxu0
    %v238 = vsel %vm138, %v188, 0
    %v241 = vsel %vm192, %v95, 0
    %243 = vmatprep.subr.bf16.mxu0 0
    %244 = vmatpush1.bf16.msra.mxu0 0
    %245 = vmatprep.subr.bf16.mxu0 0
    %246 = vmatpush1.bf16.msra.mxu0 0
    %247 = vmatprep.subr.bf16.mxu0 0
    %248 = vmatpush1.bf16.msra.mxu0 0
    %249 = vmatprep.subr.bf16.mxu0 0
    %250 = vmatpush1.bf16.msra.mxu0 0
    %251 = vmatprep.subr.bf16.mxu0 0
    %252 = vmatpush1.bf16.msra.mxu0 0
    %253 = vmatprep.subr.bf16.mxu0 0
    %254 = vmatpush1.bf16.msra.mxu0 0
    %255 = vmatprep.subr.bf16.mxu0 0
    %256 = vmatpush1.bf16.msra.mxu0 0
    %257 = vmatprep.subr.bf16.mxu0 0
    %258 = vmatpush1.bf16.msra.mxu0 %v241
    %259 = vmatprep.subr.bf16.mxu0 0
    %260 = vmatpush2.bf16.msra.mxu0 0
    %261 = vmatprep.subr.bf16.mxu0 0
    %262 = vmatpush2.bf16.msra.mxu0 0
    %263 = vmatprep.subr.bf16.mxu0 0
    %264 = vmatpush2.bf16.msra.mxu0 0
    %265 = vmatprep.subr.bf16.mxu0 0
    %266 = vmatpush2.bf16.msra.mxu0 0
    %267 = vmatprep.subr.bf16.mxu0 0
    %268 = vmatpush2.bf16.msra.mxu0 0
    %269 = vmatprep.subr.bf16.mxu0 0
    %270 = vmatpush2.bf16.msra.mxu0 0
    %271 = vmatprep.subr.bf16.mxu0 0
    %272 = vmatpush2.bf16.msra.mxu0 0
    %273 = vmatprep.subr.bf16.mxu0 0
    %274 = vmatpush2.bf16.msra.mxu0 0
    %275 = vmatprep.mubr.bf16.mxu0 0
    %276 = vmatmul.mubr.bf16.gmra.mxu0 %v238
    %v277 = vpop.f32.mrf.mxu0
    %v278 = vadd.f32 0.0, %v277
    %v279 = vpop.f32.mrf.mxu0
    %v280 = vpop.f32.mrf.mxu0
    %v281 = vadd.f32 0.0, %v280
    %v282 = vpop.f32.mrf.mxu0
    %283 = vdwg.mxu0
    %v284 = vpack.c.bf16 %v234, %v231
    %v285 = vpack.c.bf16 %v281, %v278
    %v288 = vunpack.c.l.b16 %v284
    %v289 = vunpack.c.h.b16 %v284
    %v290 = vunpack.c.l.b16 %v285
    %v291 = vunpack.c.h.b16 %v285
    %v292 = vpack.c.b16 %v288, %v288
    %v293 = vpack.c.b16 %v289, %v289
    %v294 = vpack.c.b16 %v290, %v290
    %v295 = vpack.c.b16 %v291, %v291
    %300 = vst [vmem:[#allocation2] sm:$0xf] %v292
    %301 = vst [vmem:[#allocation2 + $0x4] sm:$0xf] %v293
    %302 = vst [vmem:[#allocation2 + $0x8] sm:$0xf] %v294
    %303 = vst [vmem:[#allocation2 + $0xc] sm:$0xf] %v295
  $region21: #{attention_decoder_forward.3} parent=0 // pred_fallthru
    _
  %v304 = vld [vmem:[%s1] sm:$0xf]
  %v305 = vld [vmem:[%s1 + $0x4] sm:$0xf]
  %v306 = vld [vmem:[%s1 + $0x8] sm:$0xf]
  %v307 = vld [vmem:[%s1 + $0xc] sm:$0xf]
  %v308 = vld [vmem:[#allocation2] sm:$0xf]
  %v309 = vld [vmem:[#allocation2 + $0x4] sm:$0xf]
  %v310 = vld [vmem:[#allocation2 + $0x8] sm:$0xf]
  %v311 = vld [vmem:[#allocation2 + $0xc] sm:$0xf]
  %v312 = vld [vmem:[%s2] sm:$0xf]
  %v313 = vld [vmem:[%s2 + $0x4] sm:$0xf]
  %v314 = vld [vmem:[%s2 + $0x8] sm:$0xf]
  %v315 = vld [vmem:[%s2 + $0xc] sm:$0xf]
  %v316 = vld [vmem:[%s2 + $0x10] sm:$0xf]
  %v317 = vld [vmem:[%s2 + $0x14] sm:$0xf]
  %v318 = vld [vmem:[%s2 + $0x18] sm:$0xf]
  %v319 = vld [vmem:[%s2 + $0x1c] sm:$0xf]
  %v320 = vld [vmem:[%s2 + $0x20] sm:$0xf]
  %v321 = vld [vmem:[%s2 + $0x24] sm:$0xf]
  %v322 = vld [vmem:[%s2 + $0x28] sm:$0xf]
  %v323 = vld [vmem:[%s2 + $0x2c] sm:$0xf]
  %v324 = vld [vmem:[%s2 + $0x30] sm:$0xf]
  %v325 = vld [vmem:[%s2 + $0x34] sm:$0xf]
  %v326 = vld [vmem:[%s2 + $0x38] sm:$0xf]
  %v327 = vld [vmem:[%s2 + $0x3c] sm:$0xf]
  %v328 = vld [vmem:[%s2 + $0x40] sm:$0xf]
  %v329 = vld [vmem:[%s2 + $0x44] sm:$0xf]
  %v330 = vld [vmem:[%s2 + $0x48] sm:$0xf]
  %v331 = vld [vmem:[%s2 + $0x4c] sm:$0xf]
  %v332 = vld [vmem:[%s2 + $0x50] sm:$0xf]
  %v333 = vld [vmem:[%s2 + $0x54] sm:$0xf]
  %v334 = vld [vmem:[%s2 + $0x58] sm:$0xf]
  %v335 = vld [vmem:[%s2 + $0x5c] sm:$0xf]
  %v336 = vld [vmem:[%s2 + $0x60] sm:$0xf]
  %v337 = vld [vmem:[%s2 + $0x64] sm:$0xf]
  %v338 = vld [vmem:[%s2 + $0x68] sm:$0xf]
  %v339 = vld [vmem:[%s2 + $0x6c] sm:$0xf]
  %v340 = vld [vmem:[%s2 + $0x70] sm:$0xf]
  %v341 = vld [vmem:[%s2 + $0x74] sm:$0xf]
  %v342 = vld [vmem:[%s2 + $0x78] sm:$0xf]
  %v343 = vld [vmem:[%s2 + $0x7c] sm:$0xf]
  %v348 = vunpack.c.l.b16 %v308
  %v349 = vunpack.c.l.b16 %v309
  %v350 = vunpack.c.l.b16 %v310
  %v351 = vunpack.c.l.b16 %v311
  %v352 = vpack.c.b16 %v349, %v348
  %v353 = vpack.c.b16 %v351, %v350
  %v372 = vunpack.c.l.b16 %v328
  %v373 = vunpack.c.l.b16 %v329
  %v374 = vunpack.c.l.b16 %v330
  %v375 = vunpack.c.l.b16 %v331
  %v376 = vunpack.c.l.b16 %v332
  %v377 = vunpack.c.l.b16 %v333
  %v378 = vunpack.c.l.b16 %v334
  %v379 = vunpack.c.l.b16 %v335
  %v380 = vunpack.c.l.b16 %v336
  %v381 = vunpack.c.l.b16 %v337
  %v382 = vunpack.c.l.b16 %v338
  %v383 = vunpack.c.l.b16 %v339
  %v384 = vunpack.c.l.b16 %v340
  %v385 = vunpack.c.l.b16 %v341
  %v386 = vunpack.c.l.b16 %v342
  %v387 = vunpack.c.l.b16 %v343
  %v388 = vpack.c.b16 %v373, %v372
  %v389 = vpack.c.b16 %v375, %v374
  %v390 = vpack.c.b16 %v377, %v376
  %v391 = vpack.c.b16 %v379, %v378
  %v392 = vpack.c.b16 %v381, %v380
  %v393 = vpack.c.b16 %v383, %v382
  %v394 = vpack.c.b16 %v385, %v384
  %v395 = vpack.c.b16 %v387, %v386
  %404 = vmatprep.subr.bf16.mxu0 0
  %405 = vmatpush1.bf16.msra.mxu0 %v395
  %406 = vmatprep.subr.bf16.mxu0 0
  %407 = vmatpush1.bf16.msra.mxu0 %v394
  %408 = vmatprep.subr.bf16.mxu0 0
  %409 = vmatpush1.bf16.msra.mxu0 %v393
  %410 = vmatprep.subr.bf16.mxu0 0
  %411 = vmatpush1.bf16.msra.mxu0 %v392
  %412 = vmatprep.subr.bf16.mxu0 0
  %413 = vmatpush1.bf16.msra.mxu0 %v391
  %414 = vmatprep.subr.bf16.mxu0 0
  %415 = vmatpush1.bf16.msra.mxu0 %v390
  %416 = vmatprep.subr.bf16.mxu0 0
  %417 = vmatpush1.bf16.msra.mxu0 %v389
  %418 = vmatprep.subr.bf16.mxu0 0
  %419 = vmatpush1.bf16.msra.mxu0 %v388
  %420 = vmatprep.subr.bf16.mxu0 0
  %421 = vmatpush2.bf16.msra.mxu0 0
  %422 = vmatprep.subr.bf16.mxu0 0
  %423 = vmatpush2.bf16.msra.mxu0 0
  %424 = vmatprep.subr.bf16.mxu0 0
  %425 = vmatpush2.bf16.msra.mxu0 0
  %426 = vmatprep.subr.bf16.mxu0 0
  %427 = vmatpush2.bf16.msra.mxu0 0
  %428 = vmatprep.subr.bf16.mxu0 0
  %429 = vmatpush2.bf16.msra.mxu0 0
  %430 = vmatprep.subr.bf16.mxu0 0
  %431 = vmatpush2.bf16.msra.mxu0 0
  %432 = vmatprep.subr.bf16.mxu0 0
  %433 = vmatpush2.bf16.msra.mxu0 0
  %434 = vmatprep.subr.bf16.mxu0 0
  %435 = vmatpush2.bf16.msra.mxu0 0
  %436 = vmatprep.mubr.bf16.mxu0 0
  %437 = vmatmul.mubr.bf16.gmra.mxu0 %v352
  %v438 = vpop.f32.mrf.mxu0
  %v439 = vadd.f32 0.0, %v438
  %v440 = vpop.f32.mrf.mxu0
  %v441 = vpop.f32.mrf.mxu0
  %v442 = vadd.f32 0.0, %v441
  %v443 = vpop.f32.mrf.mxu0
  %444 = vmatprep.mubr.bf16.mxu0 0
  %445 = vmatmul.mubr.bf16.gmra.mxu0 %v353
  %v446 = vpop.f32.mrf.mxu0
  %v447 = vadd.f32 0.0, %v446
  %v448 = vpop.f32.mrf.mxu0
  %v449 = vpop.f32.mrf.mxu0
  %v450 = vadd.f32 0.0, %v449
  %v451 = vpop.f32.mrf.mxu0
  %452 = vdwg.mxu0
  %v457 = vunpack.c.l.b16 %v304
  %v458 = vunpack.c.l.b16 %v305
  %v459 = vunpack.c.l.b16 %v306
  %v460 = vunpack.c.l.b16 %v307
  %v461 = vpack.c.b16 %v458, %v457
  %v462 = vpack.c.b16 %v460, %v459
  %v481 = vunpack.c.l.b16 %v312
  %v482 = vunpack.c.l.b16 %v313
  %v483 = vunpack.c.l.b16 %v314
  %v484 = vunpack.c.l.b16 %v315
  %v485 = vunpack.c.l.b16 %v316
  %v486 = vunpack.c.l.b16 %v317
  %v487 = vunpack.c.l.b16 %v318
  %v488 = vunpack.c.l.b16 %v319
  %v489 = vunpack.c.l.b16 %v320
  %v490 = vunpack.c.l.b16 %v321
  %v491 = vunpack.c.l.b16 %v322
  %v492 = vunpack.c.l.b16 %v323
  %v493 = vunpack.c.l.b16 %v324
  %v494 = vunpack.c.l.b16 %v325
  %v495 = vunpack.c.l.b16 %v326
  %v496 = vunpack.c.l.b16 %v327
  %v497 = vpack.c.b16 %v482, %v481
  %v498 = vpack.c.b16 %v484, %v483
  %v499 = vpack.c.b16 %v486, %v485
  %v500 = vpack.c.b16 %v488, %v487
  %v501 = vpack.c.b16 %v490, %v489
  %v502 = vpack.c.b16 %v492, %v491
  %v503 = vpack.c.b16 %v494, %v493
  %v504 = vpack.c.b16 %v496, %v495
  %513 = vmatprep.subr.bf16.mxu0 0
  %514 = vmatpush1.bf16.msra.mxu0 %v504
  %515 = vmatprep.subr.bf16.mxu0 0
  %516 = vmatpush1.bf16.msra.mxu0 %v503
  %517 = vmatprep.subr.bf16.mxu0 0
  %518 = vmatpush1.bf16.msra.mxu0 %v502
  %519 = vmatprep.subr.bf16.mxu0 0
  %520 = vmatpush1.bf16.msra.mxu0 %v501
  %521 = vmatprep.subr.bf16.mxu0 0
  %522 = vmatpush1.bf16.msra.mxu0 %v500
  %523 = vmatprep.subr.bf16.mxu0 0
  %524 = vmatpush1.bf16.msra.mxu0 %v499
  %525 = vmatprep.subr.bf16.mxu0 0
  %526 = vmatpush1.bf16.msra.mxu0 %v498
  %527 = vmatprep.subr.bf16.mxu0 0
  %528 = vmatpush1.bf16.msra.mxu0 %v497
  %529 = vmatprep.subr.bf16.mxu0 0
  %530 = vmatpush2.bf16.msra.mxu0 0
  %531 = vmatprep.subr.bf16.mxu0 0
  %532 = vmatpush2.bf16.msra.mxu0 0
  %533 = vmatprep.subr.bf16.mxu0 0
  %534 = vmatpush2.bf16.msra.mxu0 0
  %535 = vmatprep.subr.bf16.mxu0 0
  %536 = vmatpush2.bf16.msra.mxu0 0
  %537 = vmatprep.subr.bf16.mxu0 0
  %538 = vmatpush2.bf16.msra.mxu0 0
  %539 = vmatprep.subr.bf16.mxu0 0
  %540 = vmatpush2.bf16.msra.mxu0 0
  %541 = vmatprep.subr.bf16.mxu0 0
  %542 = vmatpush2.bf16.msra.mxu0 0
  %543 = vmatprep.subr.bf16.mxu0 0
  %544 = vmatpush2.bf16.msra.mxu0 0
  %545 = vmatprep.mubr.bf16.mxu0 0
  %546 = vmatmul.mubr.bf16.gmra.mxu0 %v461
  %v547 = vpop.f32.mrf.mxu0
  %v548 = vadd.f32 %v439, %v547
  %v549 = vpop.f32.mrf.mxu0
  %v550 = vpop.f32.mrf.mxu0
  %v551 = vadd.f32 %v442, %v550
  %v552 = vpop.f32.mrf.mxu0
  %553 = vmatprep.mubr.bf16.mxu0 0
  %554 = vmatmul.mubr.bf16.gmra.mxu0 %v462
  %v555 = vpop.f32.mrf.mxu0
  %v556 = vadd.f32 %v447, %v555
  %v557 = vpop.f32.mrf.mxu0
  %v558 = vpop.f32.mrf.mxu0
  %v559 = vadd.f32 %v450, %v558
  %v560 = vpop.f32.mrf.mxu0
  %561 = vdwg.mxu0
  %v562 = vld [vmem:[%s3] sm:$0x1]
  %v564 = vlaneseq
  %v565 = vshrl.u32 %v564, 7
  %v566 = vsub.s32 0, %v565
  %v567 = vrot.slane %v562, %v566
  %v569 = vadd.f32 %v548, %v567
  %v570 = vadd.f32 %v551, %v567
  %v571 = vadd.f32 %v556, %v567
  %v572 = vadd.f32 %v559, %v567
  %573 = vst [vmem:[%s4] sm:$0xff] %v569
  %574 = vst [vmem:[%s4 + $0x8] sm:$0xff] %v570
  %575 = vst [vmem:[%s4 + $0x10] sm:$0xff] %v571
  %576 = vst [vmem:[%s4 + $0x18] sm:$0xff] %v572
  // Predicated region
  $region22: #{attention_decoder_forward.3} parent=0 // pred_check
    _
  $region23: #{attention_decoder_forward.3} parent=0 // pred_check_branch
    %578 = sbr.rel (0) target = $region25
  $region24: #{attention_decoder_forward.3} parent=0 // pred_region
    _
  $region25: #{attention_decoder_forward.3} parent=0 // pred_fallthru
    _
  // Predicated region
  $region26: #{attention_decoder_forward.3} parent=0 // pred_check
    _
  $region27: #{attention_decoder_forward.3} parent=0 // pred_check_branch
    %580 = sbr.rel (0) target = $region29
  $region28: #{attention_decoder_forward.3} parent=0 // pred_region
    _
  $region29: #{attention_decoder_forward.3} parent=0 // pred_fallthru
    _
  // Predicated region
  $region30: #{attention_decoder_forward.3} parent=0 // pred_check
    _
  $region31: #{attention_decoder_forward.3} parent=0 // pred_check_branch
    %582 = sbr.rel (0) target = $region33
  $region32: #{attention_decoder_forward.3} parent=0 // pred_region
    _
  $region33: #{attention_decoder_forward.3} parent=0 // pred_fallthru
    _
  // Predicated region
  $region34: #{attention_decoder_forward.3} parent=0 // pred_check
    _
  $region35: #{attention_decoder_forward.3} parent=0 // pred_check_branch
    %584 = sbr.rel (0) target = $region37
  $region36: #{attention_decoder_forward.3} parent=0 // pred_region
    _
  $region37: #{attention_decoder_forward.3} parent=0 // pred_fallthru
    _

</llo_original>
